<compile_context>
chip_gen: v7x
topology: tpu7x:2x2x1
jax: 0.10.0
libtpu: 0.0.40
codegen_flags: <defaults>
</compile_context>

<pallas_src>
import functools

import numpy as np

import jax
import jax.numpy as jnp
from jax.experimental import pallas as pl
from jax.experimental.pallas import tpu as pltpu


def _encoder_kernel(perm_ref, x_ref, wemb_ref, bemb_ref, wih_ref, whh_ref,
                    bg_ref, out_ref, *, bsz, seq, hdim):
    """Single-invocation Encoder forward.

    perm_ref : (T*B, T*B)  0/1 permutation: time-major row t*B+b <- row b*T+t
    x_ref    : (B*T, Din)  obs_traj reshaped batch-major (free reshape)
    wemb_ref : (Din, E)    spatial_embedding.weight^T
    bemb_ref : (1, E)      spatial_embedding.bias
    wih_ref  : (E, 4H)     lstm.weight_ih_l0^T   (PyTorch gate order i,f,g,o)
    whh_ref  : (H, 4H)     lstm.weight_hh_l0^T
    bg_ref   : (1, 4H)     lstm.bias_ih_l0 + lstm.bias_hh_l0
    out_ref  : (T*B, H)    LSTM outputs, time-major rows (t*B + b)
    """
    # ---- hoisted, non-recurrent precompute (whole sequence at once) ----
    # batch-major -> time-major reorder via one MXU matmul (exact 0/1 weights)
    x_tm = jnp.dot(perm_ref[...], x_ref[...],
                   preferred_element_type=jnp.float32)            # (T*B, Din)
    # spatial_embedding + relu6 (EMBEDDING_ACTIVATION_FUNCTION), all rows
    emb = jnp.dot(x_tm, wemb_ref[...],
                  preferred_element_type=jnp.float32) + bemb_ref[...]
    emb = jnp.clip(emb, 0.0, 6.0)                                  # (T*B, E)
    # input-to-hidden gate contribution + fused bias, all rows
    gx = jnp.dot(emb, wih_ref[...],
                 preferred_element_type=jnp.float32) + bg_ref[...]  # (T*B, 4H)

    whh = whh_ref[...]
    h = jnp.zeros((bsz, hdim), jnp.float32)   # init_hidden(): zeros
    c = jnp.zeros((bsz, hdim), jnp.float32)

    # ---- serial recurrence, fully unrolled (static trip count) ----
    for t in range(seq):
        gates = gx[t * bsz:(t + 1) * bsz, :] + jnp.dot(
            h, whh, preferred_element_type=jnp.float32)            # (B, 4H)
        # 2 EUP issues total: sigmoid & tanh over the full 4H lane vector,
        # then static 32-lane slices (PyTorch gate order i, f, g, o).
        sig = jax.nn.sigmoid(gates)
        tan = jnp.tanh(gates)
        i_g = sig[:, 0 * hdim:1 * hdim]
        f_g = sig[:, 1 * hdim:2 * hdim]
        g_g = tan[:, 2 * hdim:3 * hdim]
        o_g = sig[:, 3 * hdim:4 * hdim]
        c = f_g * c + i_g * g_g
        h = o_g * jnp.tanh(c)
        out_ref[t * bsz:(t + 1) * bsz, :] = h   # VMEM store; HBM writeback once


@jax.jit
def encoder_forward(obs_traj, w_emb, b_emb, w_ih, w_hh, b_ih, b_hh):
    """Pallas Encoder.forward.

    obs_traj: (B, T, Din) float32
    returns:  output (T, B, H) float32, final_h (1, B, H) float32
    """
    B, T, Din = obs_traj.shape
    E = w_emb.shape[0]
    H = w_hh.shape[1]

    # Pad batch to a sublane multiple (8) so matmul / state row tiles are full.
    Bp = ((B + 7) // 8) * 8
    x = obs_traj.astype(jnp.float32)
    if Bp != B:
        x = jnp.pad(x, ((0, Bp - B), (0, 0), (0, 0)))

    # (B, T, Din) -> (B*T, Din): contiguous reshape — free, no transpose op.
    x_flat = x.reshape(Bp * T, Din)

    # Compile-time constant permutation matrix (depends only on static shapes):
    # time-major row i = t*B + b  picks batch-major row (i % B)*T + i // B.
    idx = np.arange(T * Bp)
    src = (idx % Bp) * T + idx // Bp
    perm_np = np.zeros((T * Bp, T * Bp), np.float32)
    perm_np[idx, src] = 1.0
    perm = jnp.asarray(perm_np)

    # Pre-transpose / fuse parameters (tiny, one-time glue).
    wemb_t = w_emb.T.astype(jnp.float32)                       # (Din, E)
    bemb = b_emb.reshape(1, E).astype(jnp.float32)             # (1, E)
    wih_t = w_ih.T.astype(jnp.float32)                         # (E, 4H)
    whh_t = w_hh.T.astype(jnp.float32)                         # (H, 4H)
    bg = (b_ih + b_hh).reshape(1, 4 * H).astype(jnp.float32)   # (1, 4H)

    kernel = functools.partial(_encoder_kernel, bsz=Bp, seq=T, hdim=H)

    out_flat = pl.pallas_call(
        kernel,
        grid=(1,),
        in_specs=[
            pl.BlockSpec((T * Bp, T * Bp), lambda i: (0, 0)),  # permutation
            pl.BlockSpec((Bp * T, Din), lambda i: (0, 0)),     # x (batch-major)
            pl.BlockSpec((Din, E), lambda i: (0, 0)),          # W_emb^T
            pl.BlockSpec((1, E), lambda i: (0, 0)),            # b_emb
            pl.BlockSpec((E, 4 * H), lambda i: (0, 0)),        # W_ih^T
            pl.BlockSpec((H, 4 * H), lambda i: (0, 0)),        # W_hh^T
            pl.BlockSpec((1, 4 * H), lambda i: (0, 0)),        # fused gate bias
        ],
        out_specs=pl.BlockSpec((T * Bp, H), lambda i: (0, 0)),
        out_shape=jax.ShapeDtypeStruct((T * Bp, H), jnp.float32),
        compiler_params=pltpu.CompilerParams(
            dimension_semantics=("arbitrary",),
        ),
    )(perm, x_flat, wemb_t, bemb, wih_t, whh_t, bg)

    # Free reshape back to (T, B, H); drop batch padding if any.
    output = out_flat.reshape(T, Bp, H)[:, :B, :]
    final_h = output[T - 1:T]        # (1, B, H) — last hidden state
    return output, final_h


def encoder_reference(obs_traj, w_emb, b_emb, w_ih, w_hh, b_ih, b_hh):
    """Pure-JAX reference (mirrors torch.nn.Linear + torch.nn.LSTM)."""
    B, T, Din = obs_traj.shape
    H = w_hh.shape[1]
    e = jnp.clip(obs_traj @ w_emb.T + b_emb, 0.0, 6.0)    # (B, T, E)
    x_seq = jnp.transpose(e, (1, 0, 2))                    # (T, B, E)

    def step(carry, x_t):
        h, c = carry
        gates = x_t @ w_ih.T + b_ih + h @ w_hh.T + b_hh
        i_g = jax.nn.sigmoid(gates[:, 0 * H:1 * H])
        f_g = jax.nn.sigmoid(gates[:, 1 * H:2 * H])
        g_g = jnp.tanh(gates[:, 2 * H:3 * H])
        o_g = jax.nn.sigmoid(gates[:, 3 * H:4 * H])
        c_new = f_g * c + i_g * g_g
        h_new = o_g * jnp.tanh(c_new)
        return (h_new, c_new), h_new

    h0 = jnp.zeros((B, H), jnp.float32)
    c0 = jnp.zeros((B, H), jnp.float32)
    (h_T, _), outs = jax.lax.scan(step, (h0, c0), x_seq)
    return outs, h_T[None]


if __name__ == "__main__":
    # Small shapes consistent with Encoder.forward:
    #   obs_traj (B, T, 2), embedding_dim=16, encoder_h_dim=32, num_layers=1
    B, T, Din, E, H = 8, 8, 2, 16, 32

    key = jax.random.PRNGKey(0)
    k = jax.random.split(key, 7)
    obs_traj = jax.random.normal(k[0], (B, T, Din), jnp.float32)

    # Deterministic synthetic parameters (shapes per nn.Linear / nn.LSTM).
    w_emb = 0.3 * jax.random.normal(k[1], (E, Din), jnp.float32)   # spatial_embedding.weight
    b_emb = 0.1 * jax.random.normal(k[2], (E,), jnp.float32)       # spatial_embedding.bias
    w_ih = 0.2 * jax.random.normal(k[3], (4 * H, E), jnp.float32)  # lstm.weight_ih_l0
    w_hh = 0.2 * jax.random.normal(k[4], (4 * H, H), jnp.float32)  # lstm.weight_hh_l0
    b_ih = 0.1 * jax.random.normal(k[5], (4 * H,), jnp.float32)    # lstm.bias_ih_l0
    b_hh = 0.1 * jax.random.normal(k[6], (4 * H,), jnp.float32)    # lstm.bias_hh_l0

    out, final_h = encoder_forward(obs_traj, w_emb, b_emb, w_ih, w_hh, b_ih, b_hh)
    jax.block_until_ready((out, final_h))

    # Correctness check against the pure-JAX reference.
    out_ref, final_h_ref = encoder_reference(obs_traj, w_emb, b_emb, w_ih, w_hh, b_ih, b_hh)
    assert out.shape == (T, B, H) and final_h.shape == (1, B, H)
    assert jnp.allclose(out, out_ref, atol=1e-2, rtol=1e-2)
    assert jnp.allclose(final_h, final_h_ref, atol=1e-2, rtol=1e-2)

    # TODO(synk): dropout is a no-op here (num_layers=1, inference) and the
    # optional `state_tuple` initial-state arg is not exposed — zero init only.
    print("KERNEL_OK")
</pallas_src>

<mosaic_0001>
module attributes {stable_mosaic.version = 11 : i64} {
  func.func @_encoder_kernel(%arg0: i32, %arg1: memref<64x64xf32, #tpu.memory_space<vmem>>, %arg2: memref<64x2xf32, #tpu.memory_space<vmem>>, %arg3: memref<2x16xf32, #tpu.memory_space<vmem>>, %arg4: memref<1x16xf32, #tpu.memory_space<vmem>>, %arg5: memref<16x128xf32, #tpu.memory_space<vmem>>, %arg6: memref<32x128xf32, #tpu.memory_space<vmem>>, %arg7: memref<1x128xf32, #tpu.memory_space<vmem>>, %arg8: memref<64x32xf32, #tpu.memory_space<vmem>>) attributes {dimension_semantics = [#tpu.dimension_semantics<arbitrary>], iteration_bounds = array<i64: 1>, scalar_prefetch = 0 : i64, scratch_operands = 0 : i64, tpu.core_type = #tpu.core_type<tc>, window_params = [{pipeline_mode = #tpu.pipeline_mode<synchronous>, transform_indices = @transform_0, window_bounds = array<i64: 64, 64>}, {pipeline_mode = #tpu.pipeline_mode<synchronous>, transform_indices = @transform_1, window_bounds = array<i64: 64, 2>}, {pipeline_mode = #tpu.pipeline_mode<synchronous>, transform_indices = @transform_2, window_bounds = array<i64: 2, 16>}, {pipeline_mode = #tpu.pipeline_mode<synchronous>, transform_indices = @transform_3, window_bounds = array<i64: 1, 16>}, {pipeline_mode = #tpu.pipeline_mode<synchronous>, transform_indices = @transform_4, window_bounds = array<i64: 16, 128>}, {pipeline_mode = #tpu.pipeline_mode<synchronous>, transform_indices = @transform_5, window_bounds = array<i64: 32, 128>}, {pipeline_mode = #tpu.pipeline_mode<synchronous>, transform_indices = @transform_6, window_bounds = array<i64: 1, 128>}, {pipeline_mode = #tpu.pipeline_mode<synchronous>, transform_indices = @transform_7, window_bounds = array<i64: 64, 32>}]} {
    %c0 = arith.constant 0 : index
    %c0_0 = arith.constant 0 : index
    %0 = vector.load %arg1[%c0, %c0_0] : memref<64x64xf32, #tpu.memory_space<vmem>>, vector<64x64xf32>
    %c0_1 = arith.constant 0 : index
    %c0_2 = arith.constant 0 : index
    %1 = vector.load %arg2[%c0_1, %c0_2] : memref<64x2xf32, #tpu.memory_space<vmem>>, vector<64x2xf32>
    %cst = arith.constant dense<0.000000e+00> : vector<64x2xf32>
    %2 = tpu.matmul %0, %1, %cst {dimension_numbers = #tpu.dot_dimension_numbers<[1], [0], [0], [1], [0, 0, 1, 1], [], []>} : vector<64x64xf32>, vector<64x2xf32>, vector<64x2xf32> -> vector<64x2xf32>
    %c0_3 = arith.constant 0 : index
    %c0_4 = arith.constant 0 : index
    %3 = vector.load %arg3[%c0_3, %c0_4] : memref<2x16xf32, #tpu.memory_space<vmem>>, vector<2x16xf32>
    %cst_5 = arith.constant dense<0.000000e+00> : vector<64x16xf32>
    %4 = tpu.matmul %2, %3, %cst_5 {dimension_numbers = #tpu.dot_dimension_numbers<[1], [0], [0], [1], [0, 0, 1, 1], [], []>} : vector<64x2xf32>, vector<2x16xf32>, vector<64x16xf32> -> vector<64x16xf32>
    %c0_6 = arith.constant 0 : index
    %c0_7 = arith.constant 0 : index
    %5 = vector.load %arg4[%c0_6, %c0_7] : memref<1x16xf32, #tpu.memory_space<vmem>>, vector<1x16xf32>
    %6 = vector.broadcast %5 : vector<1x16xf32> to vector<64x16xf32>
    %7 = arith.addf %4, %6 : vector<64x16xf32>
    %cst_8 = arith.constant 0.000000e+00 : f32
    %cst_9 = arith.constant 6.000000e+00 : f32
    %8 = vector.broadcast %cst_8 : f32 to vector<64x16xf32>
    %9 = arith.maximumf %8, %7 : vector<64x16xf32>
    %10 = vector.broadcast %cst_9 : f32 to vector<64x16xf32>
    %11 = arith.minimumf %10, %9 : vector<64x16xf32>
    %c0_10 = arith.constant 0 : index
    %c0_11 = arith.constant 0 : index
    %12 = vector.load %arg5[%c0_10, %c0_11] : memref<16x128xf32, #tpu.memory_space<vmem>>, vector<16x128xf32>
    %cst_12 = arith.constant dense<0.000000e+00> : vector<64x128xf32>
    %13 = tpu.matmul %11, %12, %cst_12 {dimension_numbers = #tpu.dot_dimension_numbers<[1], [0], [0], [1], [0, 0, 1, 1], [], []>} : vector<64x16xf32>, vector<16x128xf32>, vector<64x128xf32> -> vector<64x128xf32>
    %c0_13 = arith.constant 0 : index
    %c0_14 = arith.constant 0 : index
    %14 = vector.load %arg7[%c0_13, %c0_14] : memref<1x128xf32, #tpu.memory_space<vmem>>, vector<1x128xf32>
    %15 = vector.broadcast %14 : vector<1x128xf32> to vector<64x128xf32>
    %16 = arith.addf %13, %15 : vector<64x128xf32>
    %c0_15 = arith.constant 0 : index
    %c0_16 = arith.constant 0 : index
    %17 = vector.load %arg6[%c0_15, %c0_16] : memref<32x128xf32, #tpu.memory_space<vmem>>, vector<32x128xf32>
    %cst_17 = arith.constant 0.000000e+00 : f32
    %18 = vector.broadcast %cst_17 : f32 to vector<8x32xf32>
    %cst_18 = arith.constant 0.000000e+00 : f32
    %19 = vector.broadcast %cst_18 : f32 to vector<8x32xf32>
    %20 = vector.extract_strided_slice %16 {offsets = [0, 0], sizes = [8, 128], strides = [1, 1]} : vector<64x128xf32> to vector<8x128xf32>
    %cst_19 = arith.constant dense<0.000000e+00> : vector<8x128xf32>
    %21 = tpu.matmul %18, %17, %cst_19 {dimension_numbers = #tpu.dot_dimension_numbers<[1], [0], [0], [1], [0, 0, 1, 1], [], []>} : vector<8x32xf32>, vector<32x128xf32>, vector<8x128xf32> -> vector<8x128xf32>
    %22 = arith.addf %20, %21 : vector<8x128xf32>
    %23 = arith.negf %22 : vector<8x128xf32>
    %24 = math.exp %23 : vector<8x128xf32>
    %cst_20 = arith.constant 1.000000e+00 : f32
    %25 = vector.broadcast %cst_20 : f32 to vector<8x128xf32>
    %26 = arith.addf %25, %24 : vector<8x128xf32>
    %27 = arith.divf %25, %26 : vector<8x128xf32>
    %28 = math.tanh %22 : vector<8x128xf32>
    %29 = vector.extract_strided_slice %27 {offsets = [0, 0], sizes = [8, 32], strides = [1, 1]} : vector<8x128xf32> to vector<8x32xf32>
    %30 = vector.extract_strided_slice %27 {offsets = [0, 32], sizes = [8, 32], strides = [1, 1]} : vector<8x128xf32> to vector<8x32xf32>
    %31 = vector.extract_strided_slice %28 {offsets = [0, 64], sizes = [8, 32], strides = [1, 1]} : vector<8x128xf32> to vector<8x32xf32>
    %32 = vector.extract_strided_slice %27 {offsets = [0, 96], sizes = [8, 32], strides = [1, 1]} : vector<8x128xf32> to vector<8x32xf32>
    %33 = arith.mulf %30, %19 : vector<8x32xf32>
    %34 = arith.mulf %29, %31 : vector<8x32xf32>
    %35 = arith.addf %33, %34 : vector<8x32xf32>
    %36 = math.tanh %35 : vector<8x32xf32>
    %37 = arith.mulf %32, %36 : vector<8x32xf32>
    %c0_21 = arith.constant 0 : index
    %c0_22 = arith.constant 0 : index
    %38 = vector.load %arg8[%c0_21, %c0_22] : memref<64x32xf32, #tpu.memory_space<vmem>>, vector<8x32xf32>
    tpu.vector_store %arg8[%c0_21, %c0_22], %37 {strides = array<i32>} : memref<64x32xf32, #tpu.memory_space<vmem>>, vector<8x32xf32>,
    %39 = vector.extract_strided_slice %16 {offsets = [8, 0], sizes = [8, 128], strides = [1, 1]} : vector<64x128xf32> to vector<8x128xf32>
    %cst_23 = arith.constant dense<0.000000e+00> : vector<8x128xf32>
    %40 = tpu.matmul %37, %17, %cst_23 {dimension_numbers = #tpu.dot_dimension_numbers<[1], [0], [0], [1], [0, 0, 1, 1], [], []>} : vector<8x32xf32>, vector<32x128xf32>, vector<8x128xf32> -> vector<8x128xf32>
    %41 = arith.addf %39, %40 : vector<8x128xf32>
    %42 = arith.negf %41 : vector<8x128xf32>
    %43 = math.exp %42 : vector<8x128xf32>
    %cst_24 = arith.constant 1.000000e+00 : f32
    %44 = vector.broadcast %cst_24 : f32 to vector<8x128xf32>
    %45 = arith.addf %44, %43 : vector<8x128xf32>
    %46 = arith.divf %44, %45 : vector<8x128xf32>
    %47 = math.tanh %41 : vector<8x128xf32>
    %48 = vector.extract_strided_slice %46 {offsets = [0, 0], sizes = [8, 32], strides = [1, 1]} : vector<8x128xf32> to vector<8x32xf32>
    %49 = vector.extract_strided_slice %46 {offsets = [0, 32], sizes = [8, 32], strides = [1, 1]} : vector<8x128xf32> to vector<8x32xf32>
    %50 = vector.extract_strided_slice %47 {offsets = [0, 64], sizes = [8, 32], strides = [1, 1]} : vector<8x128xf32> to vector<8x32xf32>
    %51 = vector.extract_strided_slice %46 {offsets = [0, 96], sizes = [8, 32], strides = [1, 1]} : vector<8x128xf32> to vector<8x32xf32>
    %52 = arith.mulf %49, %35 : vector<8x32xf32>
    %53 = arith.mulf %48, %50 : vector<8x32xf32>
    %54 = arith.addf %52, %53 : vector<8x32xf32>
    %55 = math.tanh %54 : vector<8x32xf32>
    %56 = arith.mulf %51, %55 : vector<8x32xf32>
    %c8 = arith.constant 8 : index
    %c0_25 = arith.constant 0 : index
    %57 = vector.load %arg8[%c8, %c0_25] : memref<64x32xf32, #tpu.memory_space<vmem>>, vector<8x32xf32>
    tpu.vector_store %arg8[%c8, %c0_25], %56 {strides = array<i32>} : memref<64x32xf32, #tpu.memory_space<vmem>>, vector<8x32xf32>,
    %58 = vector.extract_strided_slice %16 {offsets = [16, 0], sizes = [8, 128], strides = [1, 1]} : vector<64x128xf32> to vector<8x128xf32>
    %cst_26 = arith.constant dense<0.000000e+00> : vector<8x128xf32>
    %59 = tpu.matmul %56, %17, %cst_26 {dimension_numbers = #tpu.dot_dimension_numbers<[1], [0], [0], [1], [0, 0, 1, 1], [], []>} : vector<8x32xf32>, vector<32x128xf32>, vector<8x128xf32> -> vector<8x128xf32>
    %60 = arith.addf %58, %59 : vector<8x128xf32>
    %61 = arith.negf %60 : vector<8x128xf32>
    %62 = math.exp %61 : vector<8x128xf32>
    %cst_27 = arith.constant 1.000000e+00 : f32
    %63 = vector.broadcast %cst_27 : f32 to vector<8x128xf32>
    %64 = arith.addf %63, %62 : vector<8x128xf32>
    %65 = arith.divf %63, %64 : vector<8x128xf32>
    %66 = math.tanh %60 : vector<8x128xf32>
    %67 = vector.extract_strided_slice %65 {offsets = [0, 0], sizes = [8, 32], strides = [1, 1]} : vector<8x128xf32> to vector<8x32xf32>
    %68 = vector.extract_strided_slice %65 {offsets = [0, 32], sizes = [8, 32], strides = [1, 1]} : vector<8x128xf32> to vector<8x32xf32>
    %69 = vector.extract_strided_slice %66 {offsets = [0, 64], sizes = [8, 32], strides = [1, 1]} : vector<8x128xf32> to vector<8x32xf32>
    %70 = vector.extract_strided_slice %65 {offsets = [0, 96], sizes = [8, 32], strides = [1, 1]} : vector<8x128xf32> to vector<8x32xf32>
    %71 = arith.mulf %68, %54 : vector<8x32xf32>
    %72 = arith.mulf %67, %69 : vector<8x32xf32>
    %73 = arith.addf %71, %72 : vector<8x32xf32>
    %74 = math.tanh %73 : vector<8x32xf32>
    %75 = arith.mulf %70, %74 : vector<8x32xf32>
    %c16 = arith.constant 16 : index
    %c0_28 = arith.constant 0 : index
    %76 = vector.load %arg8[%c16, %c0_28] : memref<64x32xf32, #tpu.memory_space<vmem>>, vector<8x32xf32>
    tpu.vector_store %arg8[%c16, %c0_28], %75 {strides = array<i32>} : memref<64x32xf32, #tpu.memory_space<vmem>>, vector<8x32xf32>,
    %77 = vector.extract_strided_slice %16 {offsets = [24, 0], sizes = [8, 128], strides = [1, 1]} : vector<64x128xf32> to vector<8x128xf32>
    %cst_29 = arith.constant dense<0.000000e+00> : vector<8x128xf32>
    %78 = tpu.matmul %75, %17, %cst_29 {dimension_numbers = #tpu.dot_dimension_numbers<[1], [0], [0], [1], [0, 0, 1, 1], [], []>} : vector<8x32xf32>, vector<32x128xf32>, vector<8x128xf32> -> vector<8x128xf32>
    %79 = arith.addf %77, %78 : vector<8x128xf32>
    %80 = arith.negf %79 : vector<8x128xf32>
    %81 = math.exp %80 : vector<8x128xf32>
    %cst_30 = arith.constant 1.000000e+00 : f32
    %82 = vector.broadcast %cst_30 : f32 to vector<8x128xf32>
    %83 = arith.addf %82, %81 : vector<8x128xf32>
    %84 = arith.divf %82, %83 : vector<8x128xf32>
    %85 = math.tanh %79 : vector<8x128xf32>
    %86 = vector.extract_strided_slice %84 {offsets = [0, 0], sizes = [8, 32], strides = [1, 1]} : vector<8x128xf32> to vector<8x32xf32>
    %87 = vector.extract_strided_slice %84 {offsets = [0, 32], sizes = [8, 32], strides = [1, 1]} : vector<8x128xf32> to vector<8x32xf32>
    %88 = vector.extract_strided_slice %85 {offsets = [0, 64], sizes = [8, 32], strides = [1, 1]} : vector<8x128xf32> to vector<8x32xf32>
    %89 = vector.extract_strided_slice %84 {offsets = [0, 96], sizes = [8, 32], strides = [1, 1]} : vector<8x128xf32> to vector<8x32xf32>
    %90 = arith.mulf %87, %73 : vector<8x32xf32>
    %91 = arith.mulf %86, %88 : vector<8x32xf32>
    %92 = arith.addf %90, %91 : vector<8x32xf32>
    %93 = math.tanh %92 : vector<8x32xf32>
    %94 = arith.mulf %89, %93 : vector<8x32xf32>
    %c24 = arith.constant 24 : index
    %c0_31 = arith.constant 0 : index
    %95 = vector.load %arg8[%c24, %c0_31] : memref<64x32xf32, #tpu.memory_space<vmem>>, vector<8x32xf32>
    tpu.vector_store %arg8[%c24, %c0_31], %94 {strides = array<i32>} : memref<64x32xf32, #tpu.memory_space<vmem>>, vector<8x32xf32>,
    %96 = vector.extract_strided_slice %16 {offsets = [32, 0], sizes = [8, 128], strides = [1, 1]} : vector<64x128xf32> to vector<8x128xf32>
    %cst_32 = arith.constant dense<0.000000e+00> : vector<8x128xf32>
    %97 = tpu.matmul %94, %17, %cst_32 {dimension_numbers = #tpu.dot_dimension_numbers<[1], [0], [0], [1], [0, 0, 1, 1], [], []>} : vector<8x32xf32>, vector<32x128xf32>, vector<8x128xf32> -> vector<8x128xf32>
    %98 = arith.addf %96, %97 : vector<8x128xf32>
    %99 = arith.negf %98 : vector<8x128xf32>
    %100 = math.exp %99 : vector<8x128xf32>
    %cst_33 = arith.constant 1.000000e+00 : f32
    %101 = vector.broadcast %cst_33 : f32 to vector<8x128xf32>
    %102 = arith.addf %101, %100 : vector<8x128xf32>
    %103 = arith.divf %101, %102 : vector<8x128xf32>
    %104 = math.tanh %98 : vector<8x128xf32>
    %105 = vector.extract_strided_slice %103 {offsets = [0, 0], sizes = [8, 32], strides = [1, 1]} : vector<8x128xf32> to vector<8x32xf32>
    %106 = vector.extract_strided_slice %103 {offsets = [0, 32], sizes = [8, 32], strides = [1, 1]} : vector<8x128xf32> to vector<8x32xf32>
    %107 = vector.extract_strided_slice %104 {offsets = [0, 64], sizes = [8, 32], strides = [1, 1]} : vector<8x128xf32> to vector<8x32xf32>
    %108 = vector.extract_strided_slice %103 {offsets = [0, 96], sizes = [8, 32], strides = [1, 1]} : vector<8x128xf32> to vector<8x32xf32>
    %109 = arith.mulf %106, %92 : vector<8x32xf32>
    %110 = arith.mulf %105, %107 : vector<8x32xf32>
    %111 = arith.addf %109, %110 : vector<8x32xf32>
    %112 = math.tanh %111 : vector<8x32xf32>
    %113 = arith.mulf %108, %112 : vector<8x32xf32>
    %c32 = arith.constant 32 : index
    %c0_34 = arith.constant 0 : index
    %114 = vector.load %arg8[%c32, %c0_34] : memref<64x32xf32, #tpu.memory_space<vmem>>, vector<8x32xf32>
    tpu.vector_store %arg8[%c32, %c0_34], %113 {strides = array<i32>} : memref<64x32xf32, #tpu.memory_space<vmem>>, vector<8x32xf32>,
    %115 = vector.extract_strided_slice %16 {offsets = [40, 0], sizes = [8, 128], strides = [1, 1]} : vector<64x128xf32> to vector<8x128xf32>
    %cst_35 = arith.constant dense<0.000000e+00> : vector<8x128xf32>
    %116 = tpu.matmul %113, %17, %cst_35 {dimension_numbers = #tpu.dot_dimension_numbers<[1], [0], [0], [1], [0, 0, 1, 1], [], []>} : vector<8x32xf32>, vector<32x128xf32>, vector<8x128xf32> -> vector<8x128xf32>
    %117 = arith.addf %115, %116 : vector<8x128xf32>
    %118 = arith.negf %117 : vector<8x128xf32>
    %119 = math.exp %118 : vector<8x128xf32>
    %cst_36 = arith.constant 1.000000e+00 : f32
    %120 = vector.broadcast %cst_36 : f32 to vector<8x128xf32>
    %121 = arith.addf %120, %119 : vector<8x128xf32>
    %122 = arith.divf %120, %121 : vector<8x128xf32>
    %123 = math.tanh %117 : vector<8x128xf32>
    %124 = vector.extract_strided_slice %122 {offsets = [0, 0], sizes = [8, 32], strides = [1, 1]} : vector<8x128xf32> to vector<8x32xf32>
    %125 = vector.extract_strided_slice %122 {offsets = [0, 32], sizes = [8, 32], strides = [1, 1]} : vector<8x128xf32> to vector<8x32xf32>
    %126 = vector.extract_strided_slice %123 {offsets = [0, 64], sizes = [8, 32], strides = [1, 1]} : vector<8x128xf32> to vector<8x32xf32>
    %127 = vector.extract_strided_slice %122 {offsets = [0, 96], sizes = [8, 32], strides = [1, 1]} : vector<8x128xf32> to vector<8x32xf32>
    %128 = arith.mulf %125, %111 : vector<8x32xf32>
    %129 = arith.mulf %124, %126 : vector<8x32xf32>
    %130 = arith.addf %128, %129 : vector<8x32xf32>
    %131 = math.tanh %130 : vector<8x32xf32>
    %132 = arith.mulf %127, %131 : vector<8x32xf32>
    %c40 = arith.constant 40 : index
    %c0_37 = arith.constant 0 : index
    %133 = vector.load %arg8[%c40, %c0_37] : memref<64x32xf32, #tpu.memory_space<vmem>>, vector<8x32xf32>
    tpu.vector_store %arg8[%c40, %c0_37], %132 {strides = array<i32>} : memref<64x32xf32, #tpu.memory_space<vmem>>, vector<8x32xf32>,
    %134 = vector.extract_strided_slice %16 {offsets = [48, 0], sizes = [8, 128], strides = [1, 1]} : vector<64x128xf32> to vector<8x128xf32>
    %cst_38 = arith.constant dense<0.000000e+00> : vector<8x128xf32>
    %135 = tpu.matmul %132, %17, %cst_38 {dimension_numbers = #tpu.dot_dimension_numbers<[1], [0], [0], [1], [0, 0, 1, 1], [], []>} : vector<8x32xf32>, vector<32x128xf32>, vector<8x128xf32> -> vector<8x128xf32>
    %136 = arith.addf %134, %135 : vector<8x128xf32>
    %137 = arith.negf %136 : vector<8x128xf32>
    %138 = math.exp %137 : vector<8x128xf32>
    %cst_39 = arith.constant 1.000000e+00 : f32
    %139 = vector.broadcast %cst_39 : f32 to vector<8x128xf32>
    %140 = arith.addf %139, %138 : vector<8x128xf32>
    %141 = arith.divf %139, %140 : vector<8x128xf32>
    %142 = math.tanh %136 : vector<8x128xf32>
    %143 = vector.extract_strided_slice %141 {offsets = [0, 0], sizes = [8, 32], strides = [1, 1]} : vector<8x128xf32> to vector<8x32xf32>
    %144 = vector.extract_strided_slice %141 {offsets = [0, 32], sizes = [8, 32], strides = [1, 1]} : vector<8x128xf32> to vector<8x32xf32>
    %145 = vector.extract_strided_slice %142 {offsets = [0, 64], sizes = [8, 32], strides = [1, 1]} : vector<8x128xf32> to vector<8x32xf32>
    %146 = vector.extract_strided_slice %141 {offsets = [0, 96], sizes = [8, 32], strides = [1, 1]} : vector<8x128xf32> to vector<8x32xf32>
    %147 = arith.mulf %144, %130 : vector<8x32xf32>
    %148 = arith.mulf %143, %145 : vector<8x32xf32>
    %149 = arith.addf %147, %148 : vector<8x32xf32>
    %150 = math.tanh %149 : vector<8x32xf32>
    %151 = arith.mulf %146, %150 : vector<8x32xf32>
    %c48 = arith.constant 48 : index
    %c0_40 = arith.constant 0 : index
    %152 = vector.load %arg8[%c48, %c0_40] : memref<64x32xf32, #tpu.memory_space<vmem>>, vector<8x32xf32>
    tpu.vector_store %arg8[%c48, %c0_40], %151 {strides = array<i32>} : memref<64x32xf32, #tpu.memory_space<vmem>>, vector<8x32xf32>,
    %153 = vector.extract_strided_slice %16 {offsets = [56, 0], sizes = [8, 128], strides = [1, 1]} : vector<64x128xf32> to vector<8x128xf32>
    %cst_41 = arith.constant dense<0.000000e+00> : vector<8x128xf32>
    %154 = tpu.matmul %151, %17, %cst_41 {dimension_numbers = #tpu.dot_dimension_numbers<[1], [0], [0], [1], [0, 0, 1, 1], [], []>} : vector<8x32xf32>, vector<32x128xf32>, vector<8x128xf32> -> vector<8x128xf32>
    %155 = arith.addf %153, %154 : vector<8x128xf32>
    %156 = arith.negf %155 : vector<8x128xf32>
    %157 = math.exp %156 : vector<8x128xf32>
    %cst_42 = arith.constant 1.000000e+00 : f32
    %158 = vector.broadcast %cst_42 : f32 to vector<8x128xf32>
    %159 = arith.addf %158, %157 : vector<8x128xf32>
    %160 = arith.divf %158, %159 : vector<8x128xf32>
    %161 = math.tanh %155 : vector<8x128xf32>
    %162 = vector.extract_strided_slice %160 {offsets = [0, 0], sizes = [8, 32], strides = [1, 1]} : vector<8x128xf32> to vector<8x32xf32>
    %163 = vector.extract_strided_slice %160 {offsets = [0, 32], sizes = [8, 32], strides = [1, 1]} : vector<8x128xf32> to vector<8x32xf32>
    %164 = vector.extract_strided_slice %161 {offsets = [0, 64], sizes = [8, 32], strides = [1, 1]} : vector<8x128xf32> to vector<8x32xf32>
    %165 = vector.extract_strided_slice %160 {offsets = [0, 96], sizes = [8, 32], strides = [1, 1]} : vector<8x128xf32> to vector<8x32xf32>
    %166 = arith.mulf %163, %149 : vector<8x32xf32>
    %167 = arith.mulf %162, %164 : vector<8x32xf32>
    %168 = arith.addf %166, %167 : vector<8x32xf32>
    %169 = math.tanh %168 : vector<8x32xf32>
    %170 = arith.mulf %165, %169 : vector<8x32xf32>
    %c56 = arith.constant 56 : index
    %c0_43 = arith.constant 0 : index
    %171 = vector.load %arg8[%c56, %c0_43] : memref<64x32xf32, #tpu.memory_space<vmem>>, vector<8x32xf32>
    tpu.vector_store %arg8[%c56, %c0_43], %170 {strides = array<i32>} : memref<64x32xf32, #tpu.memory_space<vmem>>, vector<8x32xf32>,
    return
  }
  func.func @transform_0(%arg0: i32) -> (i32, i32) {
    %c0_i32 = arith.constant 0 : i32
    %c0_i32_0 = arith.constant 0 : i32
    %c0_i32_1 = arith.constant 0 : i32
    return %c0_i32, %c0_i32_0 : i32, i32
  }
  func.func @transform_1(%arg0: i32) -> (i32, i32) {
    %c0_i32 = arith.constant 0 : i32
    %c0_i32_0 = arith.constant 0 : i32
    %c0_i32_1 = arith.constant 0 : i32
    return %c0_i32, %c0_i32_0 : i32, i32
  }
  func.func @transform_2(%arg0: i32) -> (i32, i32) {
    %c0_i32 = arith.constant 0 : i32
    %c0_i32_0 = arith.constant 0 : i32
    %c0_i32_1 = arith.constant 0 : i32
    return %c0_i32, %c0_i32_0 : i32, i32
  }
  func.func @transform_3(%arg0: i32) -> (i32, i32) {
    %c0_i32 = arith.constant 0 : i32
    %c0_i32_0 = arith.constant 0 : i32
    %c0_i32_1 = arith.constant 0 : i32
    return %c0_i32, %c0_i32_0 : i32, i32
  }
  func.func @transform_4(%arg0: i32) -> (i32, i32) {
    %c0_i32 = arith.constant 0 : i32
    %c0_i32_0 = arith.constant 0 : i32
    %c0_i32_1 = arith.constant 0 : i32
    return %c0_i32, %c0_i32_0 : i32, i32
  }
  func.func @transform_5(%arg0: i32) -> (i32, i32) {
    %c0_i32 = arith.constant 0 : i32
    %c0_i32_0 = arith.constant 0 : i32
    %c0_i32_1 = arith.constant 0 : i32
    return %c0_i32, %c0_i32_0 : i32, i32
  }
  func.func @transform_6(%arg0: i32) -> (i32, i32) {
    %c0_i32 = arith.constant 0 : i32
    %c0_i32_0 = arith.constant 0 : i32
    %c0_i32_1 = arith.constant 0 : i32
    return %c0_i32, %c0_i32_0 : i32, i32
  }
  func.func @transform_7(%arg0: i32) -> (i32, i32) {
    %c0_i32 = arith.constant 0 : i32
    %c0_i32_0 = arith.constant 0 : i32
    %c0_i32_1 = arith.constant 0 : i32
    return %c0_i32, %c0_i32_0 : i32, i32
  }
}

</mosaic_0001>

<llo_original>
// kernel: encoder_forward.1
$region0: #{encoder_forward.1}
  #allocation0 [shape = 'u32[]', space=smem, size = 0x4, offset = 0x4, fixed_abs, tag = 'smem constant byte address 0x4 - core index']
  #allocation1 [shape = 'u32[144,128]{1,0:T(1,128)}', space=vmem, size = 0x12000, scoped, tag = 'internal scratch']
  %s0 = inlined_call_operand.vmem [shape: f32[64,64], index: 0, kind: input, shape index: {}]
  %s1 = inlined_call_operand.vmem [shape: f32[64,2], index: 1, kind: input, shape index: {}]
  %s2 = inlined_call_operand.vmem [shape: f32[2,16], index: 2, kind: input, shape index: {}]
  %s3 = inlined_call_operand.vmem [shape: f32[1,16], index: 3, kind: input, shape index: {}]
  %s4 = inlined_call_operand.vmem [shape: f32[16,128], index: 4, kind: input, shape index: {}]
  %s5 = inlined_call_operand.vmem [shape: f32[32,128], index: 5, kind: input, shape index: {}]
  %s6 = inlined_call_operand.vmem [shape: f32[1,128], index: 6, kind: input, shape index: {}]
  %s7 = inlined_call_operand.vmem [shape: f32[64,32], index: 7, kind: output, shape index: {}]
  %s8 = sld [smem:[#allocation0]]
  $region38: #{encoder_forward.1} parent=0
    _
  %s10 = ssub.s32 1, %s8
  %s11 = scalar_select 0, %s10, %s8
  // Predicated region
  $region2: #{encoder_forward.1} parent=0 // pred_check
    _
  $region3: #{encoder_forward.1} parent=0 // pred_check_branch
    %13 = sbr.rel (0) target = $region5
  $region4: #{encoder_forward.1} parent=0 // pred_region
    _
  $region5: #{encoder_forward.1} parent=0 // pred_fallthru
    _
  // Predicated region
  $region6: #{encoder_forward.1} parent=0 // pred_check
    _
  $region7: #{encoder_forward.1} parent=0 // pred_check_branch
    %15 = sbr.rel (0) target = $region9
  $region8: #{encoder_forward.1} parent=0 // pred_region
    _
  $region9: #{encoder_forward.1} parent=0 // pred_fallthru
    _
  // Predicated region
  $region10: #{encoder_forward.1} parent=0 // pred_check
    _
  $region11: #{encoder_forward.1} parent=0 // pred_check_branch
    %17 = sbr.rel (0) target = $region13
  $region12: #{encoder_forward.1} parent=0 // pred_region
    _
  $region13: #{encoder_forward.1} parent=0 // pred_fallthru
    _
  // Predicated region
  $region14: #{encoder_forward.1} parent=0 // pred_check
    _
  $region15: #{encoder_forward.1} parent=0 // pred_check_branch
    %19 = sbr.rel (0) target = $region17
  $region16: #{encoder_forward.1} parent=0 // pred_region
    _
  $region17: #{encoder_forward.1} parent=0 // pred_fallthru
    _
  // Predicated region
  $region18: #{encoder_forward.1} parent=0 // pred_check
    _
  $region19: #{encoder_forward.1} parent=0 // pred_check_branch
    %21 = sbr.rel (0) target = $region21
  $region20: #{encoder_forward.1} parent=0 // pred_region
    _
  $region21: #{encoder_forward.1} parent=0 // pred_fallthru
    _
  // Predicated region
  $region22: #{encoder_forward.1} parent=0 // pred_check
    _
  $region23: #{encoder_forward.1} parent=0 // pred_check_branch
    %23 = sbr.rel (0) target = $region25
  $region24: #{encoder_forward.1} parent=0 // pred_region
    _
  $region25: #{encoder_forward.1} parent=0 // pred_fallthru
    _
  // Predicated region
  $region26: #{encoder_forward.1} parent=0 // pred_check
    _
  $region27: #{encoder_forward.1} parent=0 // pred_check_branch
    %25 = sbr.rel (0) target = $region29
  $region28: #{encoder_forward.1} parent=0 // pred_region
    _
  $region29: #{encoder_forward.1} parent=0 // pred_fallthru
    _
  %v26 = vld [vmem:[%s0] sm:$0xff]
  %v27 = vld [vmem:[%s0 + $0x8] sm:$0xff]
  %v28 = vld [vmem:[%s0 + $0x10] sm:$0xff]
  %v29 = vld [vmem:[%s0 + $0x18] sm:$0xff]
  %v30 = vld [vmem:[%s0 + $0x20] sm:$0xff]
  %v31 = vld [vmem:[%s0 + $0x28] sm:$0xff]
  %v32 = vld [vmem:[%s0 + $0x30] sm:$0xff]
  %v33 = vld [vmem:[%s0 + $0x38] sm:$0xff]
  %v34 = vld [vmem:[%s1] sm:$0xff]
  %v35 = vld [vmem:[%s1 + $0x8] sm:$0xff]
  %v36 = vld [vmem:[%s1 + $0x10] sm:$0xff]
  %v37 = vld [vmem:[%s1 + $0x18] sm:$0xff]
  %v38 = vld [vmem:[%s1 + $0x20] sm:$0xff]
  %v39 = vld [vmem:[%s1 + $0x28] sm:$0xff]
  %v40 = vld [vmem:[%s1 + $0x30] sm:$0xff]
  %v41 = vld [vmem:[%s1 + $0x38] sm:$0xff]
  %vm42 = vcmask 523264
  %v44 = vsel %vm42, %v26, 0
  %v47 = vsel %vm42, %v27, 0
  %v50 = vsel %vm42, %v28, 0
  %v53 = vsel %vm42, %v29, 0
  %v56 = vsel %vm42, %v30, 0
  %v59 = vsel %vm42, %v31, 0
  %v62 = vsel %vm42, %v32, 0
  %v65 = vsel %vm42, %v33, 0
  %67 = vmatprep.subr.mxu0 0.0
  %68 = vmatpush1.msra.mxu0 %v34
  %69 = vmatprep.subr.mxu0 0.0
  %70 = vmatpush1.msra.mxu0 %v35
  %71 = vmatprep.subr.mxu0 0.0
  %72 = vmatpush1.msra.mxu0 %v36
  %73 = vmatprep.subr.mxu0 0.0
  %74 = vmatpush1.msra.mxu0 %v37
  %75 = vmatprep.subr.mxu0 0.0
  %76 = vmatpush1.msra.mxu0 %v38
  %77 = vmatprep.subr.mxu0 0.0
  %78 = vmatpush1.msra.mxu0 %v39
  %79 = vmatprep.subr.mxu0 0.0
  %80 = vmatpush1.msra.mxu0 %v40
  %81 = vmatprep.subr.mxu0 0.0
  %82 = vmatpush1.msra.mxu0 %v41
  %83 = vmatprep.subr.mxu0 0.0
  %84 = vmatpush1.msra.mxu0 0.0
  %85 = vmatprep.subr.mxu0 0.0
  %86 = vmatpush1.msra.mxu0 0.0
  %87 = vmatprep.subr.mxu0 0.0
  %88 = vmatpush1.msra.mxu0 0.0
  %89 = vmatprep.subr.mxu0 0.0
  %90 = vmatpush1.msra.mxu0 0.0
  %91 = vmatprep.subr.mxu0 0.0
  %92 = vmatpush1.msra.mxu0 0.0
  %93 = vmatprep.subr.mxu0 0.0
  %94 = vmatpush1.msra.mxu0 0.0
  %95 = vmatprep.subr.mxu0 0.0
  %96 = vmatpush1.msra.mxu0 0.0
  %97 = vmatprep.subr.mxu0 0.0
  %98 = vmatpush1.msra.mxu0 0.0
  %99 = vmatprep.subr.mxu0 0.0
  %100 = vmatpush1.msra.mxu0 0.0
  %101 = vmatprep.subr.mxu0 0.0
  %102 = vmatpush1.msra.mxu0 0.0
  %103 = vmatprep.subr.mxu0 0.0
  %104 = vmatpush1.msra.mxu0 0.0
  %105 = vmatprep.subr.mxu0 0.0
  %106 = vmatpush1.msra.mxu0 0.0
  %107 = vmatprep.subr.mxu0 0.0
  %108 = vmatpush1.msra.mxu0 0.0
  %109 = vmatprep.subr.mxu0 0.0
  %110 = vmatpush1.msra.mxu0 0.0
  %111 = vmatprep.subr.mxu0 0.0
  %112 = vmatpush1.msra.mxu0 0.0
  %113 = vmatprep.subr.mxu0 0.0
  %114 = vmatpush1.msra.mxu0 0.0
  %115 = vmatprep.subr.mxu0 0.0
  %116 = vmatpush1.msra.mxu0 0.0
  %117 = vmatprep.subr.mxu0 0.0
  %118 = vmatpush1.msra.mxu0 0.0
  %119 = vmatprep.subr.mxu0 0.0
  %120 = vmatpush1.msra.mxu0 0.0
  %121 = vmatprep.subr.mxu0 0.0
  %122 = vmatpush1.msra.mxu0 0.0
  %123 = vmatprep.subr.mxu0 0.0
  %124 = vmatpush1.msra.mxu0 0.0
  %125 = vmatprep.subr.mxu0 0.0
  %126 = vmatpush1.msra.mxu0 0.0
  %127 = vmatprep.subr.mxu0 0.0
  %128 = vmatpush1.msra.mxu0 0.0
  %129 = vmatprep.subr.mxu0 0.0
  %130 = vmatpush1.msra.mxu0 0.0
  %131 = vmatprep.mubr.f32.mxu0 0.0
  %132 = vmatmul.mubr.f32.gmra.mrb[0].mxu0 %v44
  %v133 = vpop.f32.mrb[0].mxu0
  %v134 = vadd.f32 0.0, %v133
  %v135 = vpop.f32.mrb[0].mxu0
  %136 = vmatprep.mubr.f32.mxu0 0.0
  %137 = vmatmul.mubr.f32.gmra.mrb[0].mxu0 %v47
  %v138 = vpop.f32.mrb[0].mxu0
  %v139 = vadd.f32 0.0, %v138
  %v140 = vpop.f32.mrb[0].mxu0
  %141 = vmatprep.mubr.f32.mxu0 0.0
  %142 = vmatmul.mubr.f32.gmra.mrb[0].mxu0 %v50
  %v143 = vpop.f32.mrb[0].mxu0
  %v144 = vadd.f32 0.0, %v143
  %v145 = vpop.f32.mrb[0].mxu0
  %146 = vmatprep.mubr.f32.mxu0 0.0
  %147 = vmatmul.mubr.f32.gmra.mrb[0].mxu0 %v53
  %v148 = vpop.f32.mrb[0].mxu0
  %v149 = vadd.f32 0.0, %v148
  %v150 = vpop.f32.mrb[0].mxu0
  %151 = vmatprep.mubr.f32.mxu0 0.0
  %152 = vmatmul.mubr.f32.gmra.mrb[0].mxu0 %v56
  %v153 = vpop.f32.mrb[0].mxu0
  %v154 = vadd.f32 0.0, %v153
  %v155 = vpop.f32.mrb[0].mxu0
  %156 = vmatprep.mubr.f32.mxu0 0.0
  %157 = vmatmul.mubr.f32.gmra.mrb[0].mxu0 %v59
  %v158 = vpop.f32.mrb[0].mxu0
  %v159 = vadd.f32 0.0, %v158
  %v160 = vpop.f32.mrb[0].mxu0
  %161 = vmatprep.mubr.f32.mxu0 0.0
  %162 = vmatmul.mubr.f32.gmra.mrb[0].mxu0 %v62
  %v163 = vpop.f32.mrb[0].mxu0
  %v164 = vadd.f32 0.0, %v163
  %v165 = vpop.f32.mrb[0].mxu0
  %166 = vmatprep.mubr.f32.mxu0 0.0
  %167 = vmatmul.mubr.f32.gmra.mrb[0].mxu0 %v65
  %v168 = vpop.f32.mrb[0].mxu0
  %v169 = vadd.f32 0.0, %v168
  %v170 = vpop.f32.mrb[0].mxu0
  %171 = vdwg.mxu0
  %v172 = vld [vmem:[%s2] sm:$0x3]
  %v173 = vld [vmem:[%s3] sm:$0x1]
  %v175 = vlaneseq
  %v176 = vshrl.u32 %v175, 7
  %v177 = vsub.s32 0, %v176
  %v178 = vrot.slane %v173, %v177
  %vm180 = vcmask 15360
  %v182 = vsel %vm180, %v134, 0
  %v185 = vsel %vm180, %v139, 0
  %v188 = vsel %vm180, %v144, 0
  %v191 = vsel %vm180, %v149, 0
  %v194 = vsel %vm180, %v154, 0
  %v197 = vsel %vm180, %v159, 0
  %v200 = vsel %vm180, %v164, 0
  %v203 = vsel %vm180, %v169, 0
  %vm205 = vcmask 1041408
  %v207 = vsel %vm205, %v172, 0
  %209 = vmatprep.subr.mxu0 0.0
  %210 = vmatpush1.msra.mxu0 %v207
  %211 = vmatprep.subr.mxu0 0.0
  %212 = vmatpush1.msra.mxu0 0.0
  %213 = vmatprep.subr.mxu0 0.0
  %214 = vmatpush1.msra.mxu0 0.0
  %215 = vmatprep.subr.mxu0 0.0
  %216 = vmatpush1.msra.mxu0 0.0
  %217 = vmatprep.subr.mxu0 0.0
  %218 = vmatpush1.msra.mxu0 0.0
  %219 = vmatprep.subr.mxu0 0.0
  %220 = vmatpush1.msra.mxu0 0.0
  %221 = vmatprep.subr.mxu0 0.0
  %222 = vmatpush1.msra.mxu0 0.0
  %223 = vmatprep.subr.mxu0 0.0
  %224 = vmatpush1.msra.mxu0 0.0
  %225 = vmatprep.subr.mxu0 0.0
  %226 = vmatpush1.msra.mxu0 0.0
  %227 = vmatprep.subr.mxu0 0.0
  %228 = vmatpush1.msra.mxu0 0.0
  %229 = vmatprep.subr.mxu0 0.0
  %230 = vmatpush1.msra.mxu0 0.0
  %231 = vmatprep.subr.mxu0 0.0
  %232 = vmatpush1.msra.mxu0 0.0
  %233 = vmatprep.subr.mxu0 0.0
  %234 = vmatpush1.msra.mxu0 0.0
  %235 = vmatprep.subr.mxu0 0.0
  %236 = vmatpush1.msra.mxu0 0.0
  %237 = vmatprep.subr.mxu0 0.0
  %238 = vmatpush1.msra.mxu0 0.0
  %239 = vmatprep.subr.mxu0 0.0
  %240 = vmatpush1.msra.mxu0 0.0
  %241 = vmatprep.subr.mxu0 0.0
  %242 = vmatpush1.msra.mxu0 0.0
  %243 = vmatprep.subr.mxu0 0.0
  %244 = vmatpush1.msra.mxu0 0.0
  %245 = vmatprep.subr.mxu0 0.0
  %246 = vmatpush1.msra.mxu0 0.0
  %247 = vmatprep.subr.mxu0 0.0
  %248 = vmatpush1.msra.mxu0 0.0
  %249 = vmatprep.subr.mxu0 0.0
  %250 = vmatpush1.msra.mxu0 0.0
  %251 = vmatprep.subr.mxu0 0.0
  %252 = vmatpush1.msra.mxu0 0.0
  %253 = vmatprep.subr.mxu0 0.0
  %254 = vmatpush1.msra.mxu0 0.0
  %255 = vmatprep.subr.mxu0 0.0
  %256 = vmatpush1.msra.mxu0 0.0
  %257 = vmatprep.subr.mxu0 0.0
  %258 = vmatpush1.msra.mxu0 0.0
  %259 = vmatprep.subr.mxu0 0.0
  %260 = vmatpush1.msra.mxu0 0.0
  %261 = vmatprep.subr.mxu0 0.0
  %262 = vmatpush1.msra.mxu0 0.0
  %263 = vmatprep.subr.mxu0 0.0
  %264 = vmatpush1.msra.mxu0 0.0
  %265 = vmatprep.subr.mxu0 0.0
  %266 = vmatpush1.msra.mxu0 0.0
  %267 = vmatprep.subr.mxu0 0.0
  %268 = vmatpush1.msra.mxu0 0.0
  %269 = vmatprep.subr.mxu0 0.0
  %270 = vmatpush1.msra.mxu0 0.0
  %271 = vmatprep.subr.mxu0 0.0
  %272 = vmatpush1.msra.mxu0 0.0
  %273 = vmatprep.mubr.f32.mxu0 0.0
  %274 = vmatmul.mubr.f32.gmra.mrb[0].mxu0 %v182
  %v275 = vpop.f32.mrb[0].mxu0
  %v276 = vadd.f32 %v178, %v275
  %v277 = vpop.f32.mrb[0].mxu0
  %278 = vmatprep.mubr.f32.mxu0 0.0
  %279 = vmatmul.mubr.f32.gmra.mrb[0].mxu0 %v185
  %v280 = vpop.f32.mrb[0].mxu0
  %v281 = vadd.f32 %v178, %v280
  %v282 = vpop.f32.mrb[0].mxu0
  %283 = vmatprep.mubr.f32.mxu0 0.0
  %284 = vmatmul.mubr.f32.gmra.mrb[0].mxu0 %v188
  %v285 = vpop.f32.mrb[0].mxu0
  %v286 = vadd.f32 %v178, %v285
  %v287 = vpop.f32.mrb[0].mxu0
  %288 = vmatprep.mubr.f32.mxu0 0.0
  %289 = vmatmul.mubr.f32.gmra.mrb[0].mxu0 %v191
  %v290 = vpop.f32.mrb[0].mxu0
  %v291 = vadd.f32 %v178, %v290
  %v292 = vpop.f32.mrb[0].mxu0
  %293 = vmatprep.mubr.f32.mxu0 0.0
  %294 = vmatmul.mubr.f32.gmra.mrb[0].mxu0 %v194
  %v295 = vpop.f32.mrb[0].mxu0
  %v296 = vadd.f32 %v178, %v295
  %v297 = vpop.f32.mrb[0].mxu0
  %298 = vmatprep.mubr.f32.mxu0 0.0
  %299 = vmatmul.mubr.f32.gmra.mrb[0].mxu0 %v197
  %v300 = vpop.f32.mrb[0].mxu0
  %v301 = vadd.f32 %v178, %v300
  %v302 = vpop.f32.mrb[0].mxu0
  %303 = vmatprep.mubr.f32.mxu0 0.0
  %304 = vmatmul.mubr.f32.gmra.mrb[0].mxu0 %v200
  %v305 = vpop.f32.mrb[0].mxu0
  %v306 = vadd.f32 %v178, %v305
  %v307 = vpop.f32.mrb[0].mxu0
  %308 = vmatprep.mubr.f32.mxu0 0.0
  %309 = vmatmul.mubr.f32.gmra.mrb[0].mxu0 %v203
  %v310 = vpop.f32.mrb[0].mxu0
  %v311 = vadd.f32 %v178, %v310
  %v312 = vpop.f32.mrb[0].mxu0
  %313 = vdwg.mxu0
  %v314 = vmax.f32 %v276, 0.0
  %v315 = vmax.f32 %v281, 0.0
  %v316 = vmax.f32 %v286, 0.0
  %v317 = vmax.f32 %v291, 0.0
  %v318 = vmax.f32 %v296, 0.0
  %v319 = vmax.f32 %v301, 0.0
  %v320 = vmax.f32 %v306, 0.0
  %v321 = vmax.f32 %v311, 0.0
  %v322 = vmin.f32 %v314, 6.0
  %v323 = vmin.f32 %v315, 6.0
  %v324 = vmin.f32 %v316, 6.0
  %v325 = vmin.f32 %v317, 6.0
  %v326 = vmin.f32 %v318, 6.0
  %v327 = vmin.f32 %v319, 6.0
  %v328 = vmin.f32 %v320, 6.0
  %v329 = vmin.f32 %v321, 6.0
  %v330 = vld [vmem:[%s4] sm:$0xff]
  %v331 = vld [vmem:[%s4 + $0x8] sm:$0xff]
  %v332 = vld [vmem:[%s6] sm:$0x1]
  %v334 = vlaneseq
  %v335 = vshrl.u32 %v334, 7
  %v336 = vsub.s32 0, %v335
  %v337 = vrot.slane %v332, %v336
  %vm339 = vcmask 130048
  %v341 = vsel %vm339, %v322, 0
  %v344 = vsel %vm339, %v323, 0
  %v347 = vsel %vm339, %v324, 0
  %v350 = vsel %vm339, %v325, 0
  %v353 = vsel %vm339, %v326, 0
  %v356 = vsel %vm339, %v327, 0
  %v359 = vsel %vm339, %v328, 0
  %v362 = vsel %vm339, %v329, 0
  %364 = vmatprep.subr.mxu0 0.0
  %365 = vmatpush1.msra.mxu0 %v330
  %366 = vmatprep.subr.mxu0 0.0
  %367 = vmatpush1.msra.mxu0 %v331
  %368 = vmatprep.subr.mxu0 0.0
  %369 = vmatpush1.msra.mxu0 0.0
  %370 = vmatprep.subr.mxu0 0.0
  %371 = vmatpush1.msra.mxu0 0.0
  %372 = vmatprep.subr.mxu0 0.0
  %373 = vmatpush1.msra.mxu0 0.0
  %374 = vmatprep.subr.mxu0 0.0
  %375 = vmatpush1.msra.mxu0 0.0
  %376 = vmatprep.subr.mxu0 0.0
  %377 = vmatpush1.msra.mxu0 0.0
  %378 = vmatprep.subr.mxu0 0.0
  %379 = vmatpush1.msra.mxu0 0.0
  %380 = vmatprep.subr.mxu0 0.0
  %381 = vmatpush1.msra.mxu0 0.0
  %382 = vmatprep.subr.mxu0 0.0
  %383 = vmatpush1.msra.mxu0 0.0
  %384 = vmatprep.subr.mxu0 0.0
  %385 = vmatpush1.msra.mxu0 0.0
  %386 = vmatprep.subr.mxu0 0.0
  %387 = vmatpush1.msra.mxu0 0.0
  %388 = vmatprep.subr.mxu0 0.0
  %389 = vmatpush1.msra.mxu0 0.0
  %390 = vmatprep.subr.mxu0 0.0
  %391 = vmatpush1.msra.mxu0 0.0
  %392 = vmatprep.subr.mxu0 0.0
  %393 = vmatpush1.msra.mxu0 0.0
  %394 = vmatprep.subr.mxu0 0.0
  %395 = vmatpush1.msra.mxu0 0.0
  %396 = vmatprep.subr.mxu0 0.0
  %397 = vmatpush1.msra.mxu0 0.0
  %398 = vmatprep.subr.mxu0 0.0
  %399 = vmatpush1.msra.mxu0 0.0
  %400 = vmatprep.subr.mxu0 0.0
  %401 = vmatpush1.msra.mxu0 0.0
  %402 = vmatprep.subr.mxu0 0.0
  %403 = vmatpush1.msra.mxu0 0.0
  %404 = vmatprep.subr.mxu0 0.0
  %405 = vmatpush1.msra.mxu0 0.0
  %406 = vmatprep.subr.mxu0 0.0
  %407 = vmatpush1.msra.mxu0 0.0
  %408 = vmatprep.subr.mxu0 0.0
  %409 = vmatpush1.msra.mxu0 0.0
  %410 = vmatprep.subr.mxu0 0.0
  %411 = vmatpush1.msra.mxu0 0.0
  %412 = vmatprep.subr.mxu0 0.0
  %413 = vmatpush1.msra.mxu0 0.0
  %414 = vmatprep.subr.mxu0 0.0
  %415 = vmatpush1.msra.mxu0 0.0
  %416 = vmatprep.subr.mxu0 0.0
  %417 = vmatpush1.msra.mxu0 0.0
  %418 = vmatprep.subr.mxu0 0.0
  %419 = vmatpush1.msra.mxu0 0.0
  %420 = vmatprep.subr.mxu0 0.0
  %421 = vmatpush1.msra.mxu0 0.0
  %422 = vmatprep.subr.mxu0 0.0
  %423 = vmatpush1.msra.mxu0 0.0
  %424 = vmatprep.subr.mxu0 0.0
  %425 = vmatpush1.msra.mxu0 0.0
  %426 = vmatprep.subr.mxu0 0.0
  %427 = vmatpush1.msra.mxu0 0.0
  %428 = vmatprep.mubr.f32.mxu0 0.0
  %429 = vmatmul.mubr.f32.gmra.mrb[0].mxu0 %v341
  %v430 = vpop.f32.mrb[0].mxu0
  %v431 = vadd.f32 %v337, %v430
  %v432 = vpop.f32.mrb[0].mxu0
  %433 = vmatprep.mubr.f32.mxu0 0.0
  %434 = vmatmul.mubr.f32.gmra.mrb[0].mxu0 %v344
  %v435 = vpop.f32.mrb[0].mxu0
  %v436 = vadd.f32 %v337, %v435
  %v437 = vpop.f32.mrb[0].mxu0
  %438 = vmatprep.mubr.f32.mxu0 0.0
  %439 = vmatmul.mubr.f32.gmra.mrb[0].mxu0 %v347
  %v440 = vpop.f32.mrb[0].mxu0
  %v441 = vadd.f32 %v337, %v440
  %v442 = vpop.f32.mrb[0].mxu0
  %443 = vmatprep.mubr.f32.mxu0 0.0
  %444 = vmatmul.mubr.f32.gmra.mrb[0].mxu0 %v350
  %v445 = vpop.f32.mrb[0].mxu0
  %v446 = vadd.f32 %v337, %v445
  %v447 = vpop.f32.mrb[0].mxu0
  %448 = vmatprep.mubr.f32.mxu0 0.0
  %449 = vmatmul.mubr.f32.gmra.mrb[0].mxu0 %v353
  %v450 = vpop.f32.mrb[0].mxu0
  %v451 = vadd.f32 %v337, %v450
  %v452 = vpop.f32.mrb[0].mxu0
  %453 = vmatprep.mubr.f32.mxu0 0.0
  %454 = vmatmul.mubr.f32.gmra.mrb[0].mxu0 %v356
  %v455 = vpop.f32.mrb[0].mxu0
  %v456 = vadd.f32 %v337, %v455
  %v457 = vpop.f32.mrb[0].mxu0
  %458 = vmatprep.mubr.f32.mxu0 0.0
  %459 = vmatmul.mubr.f32.gmra.mrb[0].mxu0 %v359
  %v460 = vpop.f32.mrb[0].mxu0
  %v461 = vadd.f32 %v337, %v460
  %v462 = vpop.f32.mrb[0].mxu0
  %463 = vmatprep.mubr.f32.mxu0 0.0
  %464 = vmatmul.mubr.f32.gmra.mrb[0].mxu0 %v362
  %v465 = vpop.f32.mrb[0].mxu0
  %v466 = vadd.f32 %v337, %v465
  %v467 = vpop.f32.mrb[0].mxu0
  %468 = vdwg.mxu0
  %v469 = vld [vmem:[%s5] sm:$0xff]
  %v470 = vld [vmem:[%s5 + $0x8] sm:$0xff]
  %v471 = vld [vmem:[%s5 + $0x10] sm:$0xff]
  %v472 = vld [vmem:[%s5 + $0x18] sm:$0xff]
  %vm473 = vcmask 261120
  %v475 = vsel %vm473, 0.0, 0
  %477 = vmatprep.subr.mxu0 0.0
  %478 = vmatpush1.msra.mxu0 %v469
  %479 = vmatprep.subr.mxu0 0.0
  %480 = vmatpush1.msra.mxu0 %v470
  %481 = vmatprep.subr.mxu0 0.0
  %482 = vmatpush1.msra.mxu0 %v471
  %483 = vmatprep.subr.mxu0 0.0
  %484 = vmatpush1.msra.mxu0 %v472
  %485 = vmatprep.subr.mxu0 0.0
  %486 = vmatpush1.msra.mxu0 0.0
  %487 = vmatprep.subr.mxu0 0.0
  %488 = vmatpush1.msra.mxu0 0.0
  %489 = vmatprep.subr.mxu0 0.0
  %490 = vmatpush1.msra.mxu0 0.0
  %491 = vmatprep.subr.mxu0 0.0
  %492 = vmatpush1.msra.mxu0 0.0
  %493 = vmatprep.subr.mxu0 0.0
  %494 = vmatpush1.msra.mxu0 0.0
  %495 = vmatprep.subr.mxu0 0.0
  %496 = vmatpush1.msra.mxu0 0.0
  %497 = vmatprep.subr.mxu0 0.0
  %498 = vmatpush1.msra.mxu0 0.0
  %499 = vmatprep.subr.mxu0 0.0
  %500 = vmatpush1.msra.mxu0 0.0
  %501 = vmatprep.subr.mxu0 0.0
  %502 = vmatpush1.msra.mxu0 0.0
  %503 = vmatprep.subr.mxu0 0.0
  %504 = vmatpush1.msra.mxu0 0.0
  %505 = vmatprep.subr.mxu0 0.0
  %506 = vmatpush1.msra.mxu0 0.0
  %507 = vmatprep.subr.mxu0 0.0
  %508 = vmatpush1.msra.mxu0 0.0
  %509 = vmatprep.subr.mxu0 0.0
  %510 = vmatpush1.msra.mxu0 0.0
  %511 = vmatprep.subr.mxu0 0.0
  %512 = vmatpush1.msra.mxu0 0.0
  %513 = vmatprep.subr.mxu0 0.0
  %514 = vmatpush1.msra.mxu0 0.0
  %515 = vmatprep.subr.mxu0 0.0
  %516 = vmatpush1.msra.mxu0 0.0
  %517 = vmatprep.subr.mxu0 0.0
  %518 = vmatpush1.msra.mxu0 0.0
  %519 = vmatprep.subr.mxu0 0.0
  %520 = vmatpush1.msra.mxu0 0.0
  %521 = vmatprep.subr.mxu0 0.0
  %522 = vmatpush1.msra.mxu0 0.0
  %523 = vmatprep.subr.mxu0 0.0
  %524 = vmatpush1.msra.mxu0 0.0
  %525 = vmatprep.subr.mxu0 0.0
  %526 = vmatpush1.msra.mxu0 0.0
  %527 = vmatprep.subr.mxu0 0.0
  %528 = vmatpush1.msra.mxu0 0.0
  %529 = vmatprep.subr.mxu0 0.0
  %530 = vmatpush1.msra.mxu0 0.0
  %531 = vmatprep.subr.mxu0 0.0
  %532 = vmatpush1.msra.mxu0 0.0
  %533 = vmatprep.subr.mxu0 0.0
  %534 = vmatpush1.msra.mxu0 0.0
  %535 = vmatprep.subr.mxu0 0.0
  %536 = vmatpush1.msra.mxu0 0.0
  %537 = vmatprep.subr.mxu0 0.0
  %538 = vmatpush1.msra.mxu0 0.0
  %539 = vmatprep.subr.mxu0 0.0
  %540 = vmatpush1.msra.mxu0 0.0
  %541 = vmatprep.mubr.f32.mxu0 0.0
  %542 = vmatmul.mubr.f32.gmra.mrb[0].mxu0 %v475
  %v543 = vpop.f32.mrb[0].mxu0
  %v544 = vadd.f32 0.0, %v543
  %v545 = vpop.f32.mrb[0].mxu0
  %546 = vdwg.mxu0
  %v547 = vadd.f32 %v431, %v544
  %v548 = vxor.u32 %v547, 2147483648
  %v549 = vmul.f32 %v548, 1.442695
  %v550 = vpow.pop %v549
  %v551 = vadd.f32 %v550, 1.0
  %v552 = vrcp.pop %v551
  %v553 = vmul.f32 1.0, %v552
  %v554 = vtanh.pop %v547
  %v555 = vmul.f32 %v553, 0.0
  %557 = vrot.lane.b32.xlu0 %v554, 64
  %v558 = vpop.permute.xlu0 %557
  %v560 = vmul.f32 %v553, %v558
  %562 = vrot.lane.b32.xlu0 %v560, 32
  %v563 = vpop.permute.xlu0 %562
  %v565 = vadd.f32 %v555, %v563
  %v566 = vtanh.pop %v565
  %568 = vrot.lane.b32.xlu0 %v566, 64
  %v569 = vpop.permute.xlu0 %568
  %v571 = vmul.f32 %v553, %v569
  %573 = vrot.lane.b32.xlu0 %v571, 32
  %v574 = vpop.permute.xlu0 %573
  %576 = vst.msk [vmem:[%s7] sm:$0xff] %vm473, %v574
  %v577 = vsel %vm473, %v574, 0
  %579 = vmatprep.subr.mxu0 0.0
  %580 = vmatpush1.msra.mxu0 %v469
  %581 = vmatprep.subr.mxu0 0.0
  %582 = vmatpush1.msra.mxu0 %v470
  %583 = vmatprep.subr.mxu0 0.0
  %584 = vmatpush1.msra.mxu0 %v471
  %585 = vmatprep.subr.mxu0 0.0
  %586 = vmatpush1.msra.mxu0 %v472
  %587 = vmatprep.subr.mxu0 0.0
  %588 = vmatpush1.msra.mxu0 0.0
  %589 = vmatprep.subr.mxu0 0.0
  %590 = vmatpush1.msra.mxu0 0.0
  %591 = vmatprep.subr.mxu0 0.0
  %592 = vmatpush1.msra.mxu0 0.0
  %593 = vmatprep.subr.mxu0 0.0
  %594 = vmatpush1.msra.mxu0 0.0
  %595 = vmatprep.subr.mxu0 0.0
  %596 = vmatpush1.msra.mxu0 0.0
  %597 = vmatprep.subr.mxu0 0.0
  %598 = vmatpush1.msra.mxu0 0.0
  %599 = vmatprep.subr.mxu0 0.0
  %600 = vmatpush1.msra.mxu0 0.0
  %601 = vmatprep.subr.mxu0 0.0
  %602 = vmatpush1.msra.mxu0 0.0
  %603 = vmatprep.subr.mxu0 0.0
  %604 = vmatpush1.msra.mxu0 0.0
  %605 = vmatprep.subr.mxu0 0.0
  %606 = vmatpush1.msra.mxu0 0.0
  %607 = vmatprep.subr.mxu0 0.0
  %608 = vmatpush1.msra.mxu0 0.0
  %609 = vmatprep.subr.mxu0 0.0
  %610 = vmatpush1.msra.mxu0 0.0
  %611 = vmatprep.subr.mxu0 0.0
  %612 = vmatpush1.msra.mxu0 0.0
  %613 = vmatprep.subr.mxu0 0.0
  %614 = vmatpush1.msra.mxu0 0.0
  %615 = vmatprep.subr.mxu0 0.0
  %616 = vmatpush1.msra.mxu0 0.0
  %617 = vmatprep.subr.mxu0 0.0
  %618 = vmatpush1.msra.mxu0 0.0
  %619 = vmatprep.subr.mxu0 0.0
  %620 = vmatpush1.msra.mxu0 0.0
  %621 = vmatprep.subr.mxu0 0.0
  %622 = vmatpush1.msra.mxu0 0.0
  %623 = vmatprep.subr.mxu0 0.0
  %624 = vmatpush1.msra.mxu0 0.0
  %625 = vmatprep.subr.mxu0 0.0
  %626 = vmatpush1.msra.mxu0 0.0
  %627 = vmatprep.subr.mxu0 0.0
  %628 = vmatpush1.msra.mxu0 0.0
  %629 = vmatprep.subr.mxu0 0.0
  %630 = vmatpush1.msra.mxu0 0.0
  %631 = vmatprep.subr.mxu0 0.0
  %632 = vmatpush1.msra.mxu0 0.0
  %633 = vmatprep.subr.mxu0 0.0
  %634 = vmatpush1.msra.mxu0 0.0
  %635 = vmatprep.subr.mxu0 0.0
  %636 = vmatpush1.msra.mxu0 0.0
  %637 = vmatprep.subr.mxu0 0.0
  %638 = vmatpush1.msra.mxu0 0.0
  %639 = vmatprep.subr.mxu0 0.0
  %640 = vmatpush1.msra.mxu0 0.0
  %641 = vmatprep.subr.mxu0 0.0
  %642 = vmatpush1.msra.mxu0 0.0
  %643 = vmatprep.mubr.f32.mxu0 0.0
  %644 = vmatmul.mubr.f32.gmra.mrb[0].mxu0 %v577
  %v645 = vpop.f32.mrb[0].mxu0
  %v646 = vadd.f32 0.0, %v645
  %v647 = vpop.f32.mrb[0].mxu0
  %648 = vdwg.mxu0
  %v649 = vadd.f32 %v436, %v646
  %v650 = vxor.u32 %v649, 2147483648
  %v651 = vmul.f32 %v650, 1.442695
  %v652 = vpow.pop %v651
  %v653 = vadd.f32 %v652, 1.0
  %v654 = vrcp.pop %v653
  %v655 = vmul.f32 1.0, %v654
  %v656 = vtanh.pop %v649
  %v657 = vmul.f32 %v655, %v565
  %659 = vrot.lane.b32.xlu0 %v656, 64
  %v660 = vpop.permute.xlu0 %659
  %v662 = vmul.f32 %v655, %v660
  %664 = vrot.lane.b32.xlu0 %v662, 32
  %v665 = vpop.permute.xlu0 %664
  %v667 = vadd.f32 %v657, %v665
  %v668 = vtanh.pop %v667
  %670 = vrot.lane.b32.xlu0 %v668, 64
  %v671 = vpop.permute.xlu0 %670
  %v673 = vmul.f32 %v655, %v671
  %675 = vrot.lane.b32.xlu0 %v673, 32
  %v676 = vpop.permute.xlu0 %675
  %678 = vst.msk [vmem:[%s7 + $0x8] sm:$0xff] %vm473, %v676
  %v679 = vsel %vm473, %v676, 0
  %681 = vmatprep.subr.mxu0 0.0
  %682 = vmatpush1.msra.mxu0 %v469
  %683 = vmatprep.subr.mxu0 0.0
  %684 = vmatpush1.msra.mxu0 %v470
  %685 = vmatprep.subr.mxu0 0.0
  %686 = vmatpush1.msra.mxu0 %v471
  %687 = vmatprep.subr.mxu0 0.0
  %688 = vmatpush1.msra.mxu0 %v472
  %689 = vmatprep.subr.mxu0 0.0
  %690 = vmatpush1.msra.mxu0 0.0
  %691 = vmatprep.subr.mxu0 0.0
  %692 = vmatpush1.msra.mxu0 0.0
  %693 = vmatprep.subr.mxu0 0.0
  %694 = vmatpush1.msra.mxu0 0.0
  %695 = vmatprep.subr.mxu0 0.0
  %696 = vmatpush1.msra.mxu0 0.0
  %697 = vmatprep.subr.mxu0 0.0
  %698 = vmatpush1.msra.mxu0 0.0
  %699 = vmatprep.subr.mxu0 0.0
  %700 = vmatpush1.msra.mxu0 0.0
  %701 = vmatprep.subr.mxu0 0.0
  %702 = vmatpush1.msra.mxu0 0.0
  %703 = vmatprep.subr.mxu0 0.0
  %704 = vmatpush1.msra.mxu0 0.0
  %705 = vmatprep.subr.mxu0 0.0
  %706 = vmatpush1.msra.mxu0 0.0
  %707 = vmatprep.subr.mxu0 0.0
  %708 = vmatpush1.msra.mxu0 0.0
  %709 = vmatprep.subr.mxu0 0.0
  %710 = vmatpush1.msra.mxu0 0.0
  %711 = vmatprep.subr.mxu0 0.0
  %712 = vmatpush1.msra.mxu0 0.0
  %713 = vmatprep.subr.mxu0 0.0
  %714 = vmatpush1.msra.mxu0 0.0
  %715 = vmatprep.subr.mxu0 0.0
  %716 = vmatpush1.msra.mxu0 0.0
  %717 = vmatprep.subr.mxu0 0.0
  %718 = vmatpush1.msra.mxu0 0.0
  %719 = vmatprep.subr.mxu0 0.0
  %720 = vmatpush1.msra.mxu0 0.0
  %721 = vmatprep.subr.mxu0 0.0
  %722 = vmatpush1.msra.mxu0 0.0
  %723 = vmatprep.subr.mxu0 0.0
  %724 = vmatpush1.msra.mxu0 0.0
  %725 = vmatprep.subr.mxu0 0.0
  %726 = vmatpush1.msra.mxu0 0.0
  %727 = vmatprep.subr.mxu0 0.0
  %728 = vmatpush1.msra.mxu0 0.0
  %729 = vmatprep.subr.mxu0 0.0
  %730 = vmatpush1.msra.mxu0 0.0
  %731 = vmatprep.subr.mxu0 0.0
  %732 = vmatpush1.msra.mxu0 0.0
  %733 = vmatprep.subr.mxu0 0.0
  %734 = vmatpush1.msra.mxu0 0.0
  %735 = vmatprep.subr.mxu0 0.0
  %736 = vmatpush1.msra.mxu0 0.0
  %737 = vmatprep.subr.mxu0 0.0
  %738 = vmatpush1.msra.mxu0 0.0
  %739 = vmatprep.subr.mxu0 0.0
  %740 = vmatpush1.msra.mxu0 0.0
  %741 = vmatprep.subr.mxu0 0.0
  %742 = vmatpush1.msra.mxu0 0.0
  %743 = vmatprep.subr.mxu0 0.0
  %744 = vmatpush1.msra.mxu0 0.0
  %745 = vmatprep.mubr.f32.mxu0 0.0
  %746 = vmatmul.mubr.f32.gmra.mrb[0].mxu0 %v679
  %v747 = vpop.f32.mrb[0].mxu0
  %v748 = vadd.f32 0.0, %v747
  %v749 = vpop.f32.mrb[0].mxu0
  %750 = vdwg.mxu0
  %v751 = vadd.f32 %v441, %v748
  %v752 = vxor.u32 %v751, 2147483648
  %v753 = vmul.f32 %v752, 1.442695
  %v754 = vpow.pop %v753
  %v755 = vadd.f32 %v754, 1.0
  %v756 = vrcp.pop %v755
  %v757 = vmul.f32 1.0, %v756
  %v758 = vtanh.pop %v751
  %v759 = vmul.f32 %v757, %v667
  %761 = vrot.lane.b32.xlu0 %v758, 64
  %v762 = vpop.permute.xlu0 %761
  %v764 = vmul.f32 %v757, %v762
  %766 = vrot.lane.b32.xlu0 %v764, 32
  %v767 = vpop.permute.xlu0 %766
  %v769 = vadd.f32 %v759, %v767
  %v770 = vtanh.pop %v769
  %772 = vrot.lane.b32.xlu0 %v770, 64
  %v773 = vpop.permute.xlu0 %772
  %v775 = vmul.f32 %v757, %v773
  %777 = vrot.lane.b32.xlu0 %v775, 32
  %v778 = vpop.permute.xlu0 %777
  %780 = vst.msk [vmem:[%s7 + $0x10] sm:$0xff] %vm473, %v778
  %v781 = vsel %vm473, %v778, 0
  %783 = vmatprep.subr.mxu0 0.0
  %784 = vmatpush1.msra.mxu0 %v469
  %785 = vmatprep.subr.mxu0 0.0
  %786 = vmatpush1.msra.mxu0 %v470
  %787 = vmatprep.subr.mxu0 0.0
  %788 = vmatpush1.msra.mxu0 %v471
  %789 = vmatprep.subr.mxu0 0.0
  %790 = vmatpush1.msra.mxu0 %v472
  %791 = vmatprep.subr.mxu0 0.0
  %792 = vmatpush1.msra.mxu0 0.0
  %793 = vmatprep.subr.mxu0 0.0
  %794 = vmatpush1.msra.mxu0 0.0
  %795 = vmatprep.subr.mxu0 0.0
  %796 = vmatpush1.msra.mxu0 0.0
  %797 = vmatprep.subr.mxu0 0.0
  %798 = vmatpush1.msra.mxu0 0.0
  %799 = vmatprep.subr.mxu0 0.0
  %800 = vmatpush1.msra.mxu0 0.0
  %801 = vmatprep.subr.mxu0 0.0
  %802 = vmatpush1.msra.mxu0 0.0
  %803 = vmatprep.subr.mxu0 0.0
  %804 = vmatpush1.msra.mxu0 0.0
  %805 = vmatprep.subr.mxu0 0.0
  %806 = vmatpush1.msra.mxu0 0.0
  %807 = vmatprep.subr.mxu0 0.0
  %808 = vmatpush1.msra.mxu0 0.0
  %809 = vmatprep.subr.mxu0 0.0
  %810 = vmatpush1.msra.mxu0 0.0
  %811 = vmatprep.subr.mxu0 0.0
  %812 = vmatpush1.msra.mxu0 0.0
  %813 = vmatprep.subr.mxu0 0.0
  %814 = vmatpush1.msra.mxu0 0.0
  %815 = vmatprep.subr.mxu0 0.0
  %816 = vmatpush1.msra.mxu0 0.0
  %817 = vmatprep.subr.mxu0 0.0
  %818 = vmatpush1.msra.mxu0 0.0
  %819 = vmatprep.subr.mxu0 0.0
  %820 = vmatpush1.msra.mxu0 0.0
  %821 = vmatprep.subr.mxu0 0.0
  %822 = vmatpush1.msra.mxu0 0.0
  %823 = vmatprep.subr.mxu0 0.0
  %824 = vmatpush1.msra.mxu0 0.0
  %825 = vmatprep.subr.mxu0 0.0
  %826 = vmatpush1.msra.mxu0 0.0
  %827 = vmatprep.subr.mxu0 0.0
  %828 = vmatpush1.msra.mxu0 0.0
  %829 = vmatprep.subr.mxu0 0.0
  %830 = vmatpush1.msra.mxu0 0.0
  %831 = vmatprep.subr.mxu0 0.0
  %832 = vmatpush1.msra.mxu0 0.0
  %833 = vmatprep.subr.mxu0 0.0
  %834 = vmatpush1.msra.mxu0 0.0
  %835 = vmatprep.subr.mxu0 0.0
  %836 = vmatpush1.msra.mxu0 0.0
  %837 = vmatprep.subr.mxu0 0.0
  %838 = vmatpush1.msra.mxu0 0.0
  %839 = vmatprep.subr.mxu0 0.0
  %840 = vmatpush1.msra.mxu0 0.0
  %841 = vmatprep.subr.mxu0 0.0
  %842 = vmatpush1.msra.mxu0 0.0
  %843 = vmatprep.subr.mxu0 0.0
  %844 = vmatpush1.msra.mxu0 0.0
  %845 = vmatprep.subr.mxu0 0.0
  %846 = vmatpush1.msra.mxu0 0.0
  %847 = vmatprep.mubr.f32.mxu0 0.0
  %848 = vmatmul.mubr.f32.gmra.mrb[0].mxu0 %v781
  %v849 = vpop.f32.mrb[0].mxu0
  %v850 = vadd.f32 0.0, %v849
  %v851 = vpop.f32.mrb[0].mxu0
  %852 = vdwg.mxu0
  %v853 = vadd.f32 %v446, %v850
  %v854 = vxor.u32 %v853, 2147483648
  %v855 = vmul.f32 %v854, 1.442695
  %v856 = vpow.pop %v855
  %v857 = vadd.f32 %v856, 1.0
  %v858 = vrcp.pop %v857
  %v859 = vmul.f32 1.0, %v858
  %v860 = vtanh.pop %v853
  %v861 = vmul.f32 %v859, %v769
  %863 = vrot.lane.b32.xlu0 %v860, 64
  %v864 = vpop.permute.xlu0 %863
  %v866 = vmul.f32 %v859, %v864
  %868 = vrot.lane.b32.xlu0 %v866, 32
  %v869 = vpop.permute.xlu0 %868
  %v871 = vadd.f32 %v861, %v869
  %v872 = vtanh.pop %v871
  %874 = vrot.lane.b32.xlu0 %v872, 64
  %v875 = vpop.permute.xlu0 %874
  %v877 = vmul.f32 %v859, %v875
  %879 = vrot.lane.b32.xlu0 %v877, 32
  %v880 = vpop.permute.xlu0 %879
  %882 = vst.msk [vmem:[%s7 + $0x18] sm:$0xff] %vm473, %v880
  %v883 = vsel %vm473, %v880, 0
  %885 = vmatprep.subr.mxu0 0.0
  %886 = vmatpush1.msra.mxu0 %v469
  %887 = vmatprep.subr.mxu0 0.0
  %888 = vmatpush1.msra.mxu0 %v470
  %889 = vmatprep.subr.mxu0 0.0
  %890 = vmatpush1.msra.mxu0 %v471
  %891 = vmatprep.subr.mxu0 0.0
  %892 = vmatpush1.msra.mxu0 %v472
  %893 = vmatprep.subr.mxu0 0.0
  %894 = vmatpush1.msra.mxu0 0.0
  %895 = vmatprep.subr.mxu0 0.0
  %896 = vmatpush1.msra.mxu0 0.0
  %897 = vmatprep.subr.mxu0 0.0
  %898 = vmatpush1.msra.mxu0 0.0
  %899 = vmatprep.subr.mxu0 0.0
  %900 = vmatpush1.msra.mxu0 0.0
  %901 = vmatprep.subr.mxu0 0.0
  %902 = vmatpush1.msra.mxu0 0.0
  %903 = vmatprep.subr.mxu0 0.0
  %904 = vmatpush1.msra.mxu0 0.0
  %905 = vmatprep.subr.mxu0 0.0
  %906 = vmatpush1.msra.mxu0 0.0
  %907 = vmatprep.subr.mxu0 0.0
  %908 = vmatpush1.msra.mxu0 0.0
  %909 = vmatprep.subr.mxu0 0.0
  %910 = vmatpush1.msra.mxu0 0.0
  %911 = vmatprep.subr.mxu0 0.0
  %912 = vmatpush1.msra.mxu0 0.0
  %913 = vmatprep.subr.mxu0 0.0
  %914 = vmatpush1.msra.mxu0 0.0
  %915 = vmatprep.subr.mxu0 0.0
  %916 = vmatpush1.msra.mxu0 0.0
  %917 = vmatprep.subr.mxu0 0.0
  %918 = vmatpush1.msra.mxu0 0.0
  %919 = vmatprep.subr.mxu0 0.0
  %920 = vmatpush1.msra.mxu0 0.0
  %921 = vmatprep.subr.mxu0 0.0
  %922 = vmatpush1.msra.mxu0 0.0
  %923 = vmatprep.subr.mxu0 0.0
  %924 = vmatpush1.msra.mxu0 0.0
  %925 = vmatprep.subr.mxu0 0.0
  %926 = vmatpush1.msra.mxu0 0.0
  %927 = vmatprep.subr.mxu0 0.0
  %928 = vmatpush1.msra.mxu0 0.0
  %929 = vmatprep.subr.mxu0 0.0
  %930 = vmatpush1.msra.mxu0 0.0
  %931 = vmatprep.subr.mxu0 0.0
  %932 = vmatpush1.msra.mxu0 0.0
  %933 = vmatprep.subr.mxu0 0.0
  %934 = vmatpush1.msra.mxu0 0.0
  %935 = vmatprep.subr.mxu0 0.0
  %936 = vmatpush1.msra.mxu0 0.0
  %937 = vmatprep.subr.mxu0 0.0
  %938 = vmatpush1.msra.mxu0 0.0
  %939 = vmatprep.subr.mxu0 0.0
  %940 = vmatpush1.msra.mxu0 0.0
  %941 = vmatprep.subr.mxu0 0.0
  %942 = vmatpush1.msra.mxu0 0.0
  %943 = vmatprep.subr.mxu0 0.0
  %944 = vmatpush1.msra.mxu0 0.0
  %945 = vmatprep.subr.mxu0 0.0
  %946 = vmatpush1.msra.mxu0 0.0
  %947 = vmatprep.subr.mxu0 0.0
  %948 = vmatpush1.msra.mxu0 0.0
  %949 = vmatprep.mubr.f32.mxu0 0.0
  %950 = vmatmul.mubr.f32.gmra.mrb[0].mxu0 %v883
  %v951 = vpop.f32.mrb[0].mxu0
  %v952 = vadd.f32 0.0, %v951
  %v953 = vpop.f32.mrb[0].mxu0
  %954 = vdwg.mxu0
  %v955 = vadd.f32 %v451, %v952
  %v956 = vxor.u32 %v955, 2147483648
  %v957 = vmul.f32 %v956, 1.442695
  %v958 = vpow.pop %v957
  %v959 = vadd.f32 %v958, 1.0
  %v960 = vrcp.pop %v959
  %v961 = vmul.f32 1.0, %v960
  %v962 = vtanh.pop %v955
  %v963 = vmul.f32 %v961, %v871
  %965 = vrot.lane.b32.xlu0 %v962, 64
  %v966 = vpop.permute.xlu0 %965
  %v968 = vmul.f32 %v961, %v966
  %970 = vrot.lane.b32.xlu0 %v968, 32
  %v971 = vpop.permute.xlu0 %970
  %v973 = vadd.f32 %v963, %v971
  %v974 = vtanh.pop %v973
  %976 = vrot.lane.b32.xlu0 %v974, 64
  %v977 = vpop.permute.xlu0 %976
  %v979 = vmul.f32 %v961, %v977
  %981 = vrot.lane.b32.xlu0 %v979, 32
  %v982 = vpop.permute.xlu0 %981
  %984 = vst.msk [vmem:[%s7 + $0x20] sm:$0xff] %vm473, %v982
  %v985 = vsel %vm473, %v982, 0
  %987 = vmatprep.subr.mxu0 0.0
  %988 = vmatpush1.msra.mxu0 %v469
  %989 = vmatprep.subr.mxu0 0.0
  %990 = vmatpush1.msra.mxu0 %v470
  %991 = vmatprep.subr.mxu0 0.0
  %992 = vmatpush1.msra.mxu0 %v471
  %993 = vmatprep.subr.mxu0 0.0
  %994 = vmatpush1.msra.mxu0 %v472
  %995 = vmatprep.subr.mxu0 0.0
  %996 = vmatpush1.msra.mxu0 0.0
  %997 = vmatprep.subr.mxu0 0.0
  %998 = vmatpush1.msra.mxu0 0.0
  %999 = vmatprep.subr.mxu0 0.0
  %1000 = vmatpush1.msra.mxu0 0.0
  %1001 = vmatprep.subr.mxu0 0.0
  %1002 = vmatpush1.msra.mxu0 0.0
  %1003 = vmatprep.subr.mxu0 0.0
  %1004 = vmatpush1.msra.mxu0 0.0
  %1005 = vmatprep.subr.mxu0 0.0
  %1006 = vmatpush1.msra.mxu0 0.0
  %1007 = vmatprep.subr.mxu0 0.0
  %1008 = vmatpush1.msra.mxu0 0.0
  %1009 = vmatprep.subr.mxu0 0.0
  %1010 = vmatpush1.msra.mxu0 0.0
  %1011 = vmatprep.subr.mxu0 0.0
  %1012 = vmatpush1.msra.mxu0 0.0
  %1013 = vmatprep.subr.mxu0 0.0
  %1014 = vmatpush1.msra.mxu0 0.0
  %1015 = vmatprep.subr.mxu0 0.0
  %1016 = vmatpush1.msra.mxu0 0.0
  %1017 = vmatprep.subr.mxu0 0.0
  %1018 = vmatpush1.msra.mxu0 0.0
  %1019 = vmatprep.subr.mxu0 0.0
  %1020 = vmatpush1.msra.mxu0 0.0
  %1021 = vmatprep.subr.mxu0 0.0
  %1022 = vmatpush1.msra.mxu0 0.0
  %1023 = vmatprep.subr.mxu0 0.0
  %1024 = vmatpush1.msra.mxu0 0.0
  %1025 = vmatprep.subr.mxu0 0.0
  %1026 = vmatpush1.msra.mxu0 0.0
  %1027 = vmatprep.subr.mxu0 0.0
  %1028 = vmatpush1.msra.mxu0 0.0
  %1029 = vmatprep.subr.mxu0 0.0
  %1030 = vmatpush1.msra.mxu0 0.0
  %1031 = vmatprep.subr.mxu0 0.0
  %1032 = vmatpush1.msra.mxu0 0.0
  %1033 = vmatprep.subr.mxu0 0.0
  %1034 = vmatpush1.msra.mxu0 0.0
  %1035 = vmatprep.subr.mxu0 0.0
  %1036 = vmatpush1.msra.mxu0 0.0
  %1037 = vmatprep.subr.mxu0 0.0
  %1038 = vmatpush1.msra.mxu0 0.0
  %1039 = vmatprep.subr.mxu0 0.0
  %1040 = vmatpush1.msra.mxu0 0.0
  %1041 = vmatprep.subr.mxu0 0.0
  %1042 = vmatpush1.msra.mxu0 0.0
  %1043 = vmatprep.subr.mxu0 0.0
  %1044 = vmatpush1.msra.mxu0 0.0
  %1045 = vmatprep.subr.mxu0 0.0
  %1046 = vmatpush1.msra.mxu0 0.0
  %1047 = vmatprep.subr.mxu0 0.0
  %1048 = vmatpush1.msra.mxu0 0.0
  %1049 = vmatprep.subr.mxu0 0.0
  %1050 = vmatpush1.msra.mxu0 0.0
  %1051 = vmatprep.mubr.f32.mxu0 0.0
  %1052 = vmatmul.mubr.f32.gmra.mrb[0].mxu0 %v985
  %v1053 = vpop.f32.mrb[0].mxu0
  %v1054 = vadd.f32 0.0, %v1053
  %v1055 = vpop.f32.mrb[0].mxu0
  %1056 = vdwg.mxu0
  %v1057 = vadd.f32 %v456, %v1054
  %v1058 = vxor.u32 %v1057, 2147483648
  %v1059 = vmul.f32 %v1058, 1.442695
  %v1060 = vpow.pop %v1059
  %v1061 = vadd.f32 %v1060, 1.0
  %v1062 = vrcp.pop %v1061
  %v1063 = vmul.f32 1.0, %v1062
  %v1064 = vtanh.pop %v1057
  %v1065 = vmul.f32 %v1063, %v973
  %1067 = vrot.lane.b32.xlu0 %v1064, 64
  %v1068 = vpop.permute.xlu0 %1067
  %v1070 = vmul.f32 %v1063, %v1068
  %1072 = vrot.lane.b32.xlu0 %v1070, 32
  %v1073 = vpop.permute.xlu0 %1072
  %v1075 = vadd.f32 %v1065, %v1073
  %v1076 = vtanh.pop %v1075
  %1078 = vrot.lane.b32.xlu0 %v1076, 64
  %v1079 = vpop.permute.xlu0 %1078
  %v1081 = vmul.f32 %v1063, %v1079
  %1083 = vrot.lane.b32.xlu0 %v1081, 32
  %v1084 = vpop.permute.xlu0 %1083
  %1086 = vst.msk [vmem:[%s7 + $0x28] sm:$0xff] %vm473, %v1084
  %v1087 = vsel %vm473, %v1084, 0
  %1089 = vmatprep.subr.mxu0 0.0
  %1090 = vmatpush1.msra.mxu0 %v469
  %1091 = vmatprep.subr.mxu0 0.0
  %1092 = vmatpush1.msra.mxu0 %v470
  %1093 = vmatprep.subr.mxu0 0.0
  %1094 = vmatpush1.msra.mxu0 %v471
  %1095 = vmatprep.subr.mxu0 0.0
  %1096 = vmatpush1.msra.mxu0 %v472
  %1097 = vmatprep.subr.mxu0 0.0
  %1098 = vmatpush1.msra.mxu0 0.0
  %1099 = vmatprep.subr.mxu0 0.0
  %1100 = vmatpush1.msra.mxu0 0.0
  %1101 = vmatprep.subr.mxu0 0.0
  %1102 = vmatpush1.msra.mxu0 0.0
  %1103 = vmatprep.subr.mxu0 0.0
  %1104 = vmatpush1.msra.mxu0 0.0
  %1105 = vmatprep.subr.mxu0 0.0
  %1106 = vmatpush1.msra.mxu0 0.0
  %1107 = vmatprep.subr.mxu0 0.0
  %1108 = vmatpush1.msra.mxu0 0.0
  %1109 = vmatprep.subr.mxu0 0.0
  %1110 = vmatpush1.msra.mxu0 0.0
  %1111 = vmatprep.subr.mxu0 0.0
  %1112 = vmatpush1.msra.mxu0 0.0
  %1113 = vmatprep.subr.mxu0 0.0
  %1114 = vmatpush1.msra.mxu0 0.0
  %1115 = vmatprep.subr.mxu0 0.0
  %1116 = vmatpush1.msra.mxu0 0.0
  %1117 = vmatprep.subr.mxu0 0.0
  %1118 = vmatpush1.msra.mxu0 0.0
  %1119 = vmatprep.subr.mxu0 0.0
  %1120 = vmatpush1.msra.mxu0 0.0
  %1121 = vmatprep.subr.mxu0 0.0
  %1122 = vmatpush1.msra.mxu0 0.0
  %1123 = vmatprep.subr.mxu0 0.0
  %1124 = vmatpush1.msra.mxu0 0.0
  %1125 = vmatprep.subr.mxu0 0.0
  %1126 = vmatpush1.msra.mxu0 0.0
  %1127 = vmatprep.subr.mxu0 0.0
  %1128 = vmatpush1.msra.mxu0 0.0
  %1129 = vmatprep.subr.mxu0 0.0
  %1130 = vmatpush1.msra.mxu0 0.0
  %1131 = vmatprep.subr.mxu0 0.0
  %1132 = vmatpush1.msra.mxu0 0.0
  %1133 = vmatprep.subr.mxu0 0.0
  %1134 = vmatpush1.msra.mxu0 0.0
  %1135 = vmatprep.subr.mxu0 0.0
  %1136 = vmatpush1.msra.mxu0 0.0
  %1137 = vmatprep.subr.mxu0 0.0
  %1138 = vmatpush1.msra.mxu0 0.0
  %1139 = vmatprep.subr.mxu0 0.0
  %1140 = vmatpush1.msra.mxu0 0.0
  %1141 = vmatprep.subr.mxu0 0.0
  %1142 = vmatpush1.msra.mxu0 0.0
  %1143 = vmatprep.subr.mxu0 0.0
  %1144 = vmatpush1.msra.mxu0 0.0
  %1145 = vmatprep.subr.mxu0 0.0
  %1146 = vmatpush1.msra.mxu0 0.0
  %1147 = vmatprep.subr.mxu0 0.0
  %1148 = vmatpush1.msra.mxu0 0.0
  %1149 = vmatprep.subr.mxu0 0.0
  %1150 = vmatpush1.msra.mxu0 0.0
  %1151 = vmatprep.subr.mxu0 0.0
  %1152 = vmatpush1.msra.mxu0 0.0
  %1153 = vmatprep.mubr.f32.mxu0 0.0
  %1154 = vmatmul.mubr.f32.gmra.mrb[0].mxu0 %v1087
  %v1155 = vpop.f32.mrb[0].mxu0
  %v1156 = vadd.f32 0.0, %v1155
  %v1157 = vpop.f32.mrb[0].mxu0
  %1158 = vdwg.mxu0
  %v1159 = vadd.f32 %v461, %v1156
  %v1160 = vxor.u32 %v1159, 2147483648
  %v1161 = vmul.f32 %v1160, 1.442695
  %v1162 = vpow.pop %v1161
  %v1163 = vadd.f32 %v1162, 1.0
  %v1164 = vrcp.pop %v1163
  %v1165 = vmul.f32 1.0, %v1164
  %v1166 = vtanh.pop %v1159
  %v1167 = vmul.f32 %v1165, %v1075
  %1169 = vrot.lane.b32.xlu0 %v1166, 64
  %v1170 = vpop.permute.xlu0 %1169
  %v1172 = vmul.f32 %v1165, %v1170
  %1174 = vrot.lane.b32.xlu0 %v1172, 32
  %v1175 = vpop.permute.xlu0 %1174
  %v1177 = vadd.f32 %v1167, %v1175
  %v1178 = vtanh.pop %v1177
  %1180 = vrot.lane.b32.xlu0 %v1178, 64
  %v1181 = vpop.permute.xlu0 %1180
  %v1183 = vmul.f32 %v1165, %v1181
  %1185 = vrot.lane.b32.xlu0 %v1183, 32
  %v1186 = vpop.permute.xlu0 %1185
  %1188 = vst.msk [vmem:[%s7 + $0x30] sm:$0xff] %vm473, %v1186
  %v1189 = vsel %vm473, %v1186, 0
  %1191 = vmatprep.subr.mxu0 0.0
  %1192 = vmatpush1.msra.mxu0 %v469
  %1193 = vmatprep.subr.mxu0 0.0
  %1194 = vmatpush1.msra.mxu0 %v470
  %1195 = vmatprep.subr.mxu0 0.0
  %1196 = vmatpush1.msra.mxu0 %v471
  %1197 = vmatprep.subr.mxu0 0.0
  %1198 = vmatpush1.msra.mxu0 %v472
  %1199 = vmatprep.subr.mxu0 0.0
  %1200 = vmatpush1.msra.mxu0 0.0
  %1201 = vmatprep.subr.mxu0 0.0
  %1202 = vmatpush1.msra.mxu0 0.0
  %1203 = vmatprep.subr.mxu0 0.0
  %1204 = vmatpush1.msra.mxu0 0.0
  %1205 = vmatprep.subr.mxu0 0.0
  %1206 = vmatpush1.msra.mxu0 0.0
  %1207 = vmatprep.subr.mxu0 0.0
  %1208 = vmatpush1.msra.mxu0 0.0
  %1209 = vmatprep.subr.mxu0 0.0
  %1210 = vmatpush1.msra.mxu0 0.0
  %1211 = vmatprep.subr.mxu0 0.0
  %1212 = vmatpush1.msra.mxu0 0.0
  %1213 = vmatprep.subr.mxu0 0.0
  %1214 = vmatpush1.msra.mxu0 0.0
  %1215 = vmatprep.subr.mxu0 0.0
  %1216 = vmatpush1.msra.mxu0 0.0
  %1217 = vmatprep.subr.mxu0 0.0
  %1218 = vmatpush1.msra.mxu0 0.0
  %1219 = vmatprep.subr.mxu0 0.0
  %1220 = vmatpush1.msra.mxu0 0.0
  %1221 = vmatprep.subr.mxu0 0.0
  %1222 = vmatpush1.msra.mxu0 0.0
  %1223 = vmatprep.subr.mxu0 0.0
  %1224 = vmatpush1.msra.mxu0 0.0
  %1225 = vmatprep.subr.mxu0 0.0
  %1226 = vmatpush1.msra.mxu0 0.0
  %1227 = vmatprep.subr.mxu0 0.0
  %1228 = vmatpush1.msra.mxu0 0.0
  %1229 = vmatprep.subr.mxu0 0.0
  %1230 = vmatpush1.msra.mxu0 0.0
  %1231 = vmatprep.subr.mxu0 0.0
  %1232 = vmatpush1.msra.mxu0 0.0
  %1233 = vmatprep.subr.mxu0 0.0
  %1234 = vmatpush1.msra.mxu0 0.0
  %1235 = vmatprep.subr.mxu0 0.0
  %1236 = vmatpush1.msra.mxu0 0.0
  %1237 = vmatprep.subr.mxu0 0.0
  %1238 = vmatpush1.msra.mxu0 0.0
  %1239 = vmatprep.subr.mxu0 0.0
  %1240 = vmatpush1.msra.mxu0 0.0
  %1241 = vmatprep.subr.mxu0 0.0
  %1242 = vmatpush1.msra.mxu0 0.0
  %1243 = vmatprep.subr.mxu0 0.0
  %1244 = vmatpush1.msra.mxu0 0.0
  %1245 = vmatprep.subr.mxu0 0.0
  %1246 = vmatpush1.msra.mxu0 0.0
  %1247 = vmatprep.subr.mxu0 0.0
  %1248 = vmatpush1.msra.mxu0 0.0
  %1249 = vmatprep.subr.mxu0 0.0
  %1250 = vmatpush1.msra.mxu0 0.0
  %1251 = vmatprep.subr.mxu0 0.0
  %1252 = vmatpush1.msra.mxu0 0.0
  %1253 = vmatprep.subr.mxu0 0.0
  %1254 = vmatpush1.msra.mxu0 0.0
  %1255 = vmatprep.mubr.f32.mxu0 0.0
  %1256 = vmatmul.mubr.f32.gmra.mrb[0].mxu0 %v1189
  %v1257 = vpop.f32.mrb[0].mxu0
  %v1258 = vadd.f32 0.0, %v1257
  %v1259 = vpop.f32.mrb[0].mxu0
  %1260 = vdwg.mxu0
  %v1261 = vadd.f32 %v466, %v1258
  %v1262 = vxor.u32 %v1261, 2147483648
  %v1263 = vmul.f32 %v1262, 1.442695
  %v1264 = vpow.pop %v1263
  %v1265 = vadd.f32 %v1264, 1.0
  %v1266 = vrcp.pop %v1265
  %v1267 = vmul.f32 1.0, %v1266
  %v1268 = vtanh.pop %v1261
  %v1269 = vmul.f32 %v1267, %v1177
  %1271 = vrot.lane.b32.xlu0 %v1268, 64
  %v1272 = vpop.permute.xlu0 %1271
  %v1274 = vmul.f32 %v1267, %v1272
  %1276 = vrot.lane.b32.xlu0 %v1274, 32
  %v1277 = vpop.permute.xlu0 %1276
  %v1279 = vadd.f32 %v1269, %v1277
  %v1280 = vtanh.pop %v1279
  %1282 = vrot.lane.b32.xlu0 %v1280, 64
  %v1283 = vpop.permute.xlu0 %1282
  %v1285 = vmul.f32 %v1267, %v1283
  %1287 = vrot.lane.b32.xlu0 %v1285, 32
  %v1288 = vpop.permute.xlu0 %1287
  %1290 = vst.msk [vmem:[%s7 + $0x38] sm:$0xff] %vm473, %v1288
  // Predicated region
  $region30: #{encoder_forward.1} parent=0 // pred_check
    _
  $region31: #{encoder_forward.1} parent=0 // pred_check_branch
    %1292 = sbr.rel (0) target = $region33
  $region32: #{encoder_forward.1} parent=0 // pred_region
    _
  $region33: #{encoder_forward.1} parent=0 // pred_fallthru
    _
  // Predicated region
  $region34: #{encoder_forward.1} parent=0 // pred_check
    _
  $region35: #{encoder_forward.1} parent=0 // pred_check_branch
    %1294 = sbr.rel (0) target = $region37
  $region36: #{encoder_forward.1} parent=0 // pred_region
    _
  $region37: #{encoder_forward.1} parent=0 // pred_fallthru
    _

</llo_original>
